<compile_context>
chip_gen: v7x
topology: tpu7x:2x2x1
jax: 0.10.0
libtpu: 0.0.40
codegen_flags: <defaults>
</compile_context>

<pallas_src>
import functools

import jax
import jax.numpy as jnp
from jax.experimental import pallas as pl
from jax.experimental.pallas import tpu as pltpu

EPS = 1e-5                         # BatchNorm2d default eps
VMEM_LIMIT = 32 * 1024 * 1024      # explicit scoped-VMEM limit (all gens OK)
VMEM_BUDGET = 14 * 1024 * 1024     # per-call working-set target (v5e-safe)


# ---------------------------------------------------------------------------
# Tiling helpers
# ---------------------------------------------------------------------------
def _choose_tile_c(cout):
    """Cout (sublane) tile: full extent when small, else a mult-of-8 divisor."""
    if cout <= 256:
        return cout
    for t in range(256, 7, -8):
        if cout % t == 0:
            return t
    return cout


def _choose_tile_m(m, bytes_per_col, resident_bytes, budget=VMEM_BUDGET):
    """Largest lane (M) tile that fits the VMEM budget.

    Prefers a single full-extent block; otherwise the largest multiple-of-128
    divisor of m (so blocks stay exact -- no ragged tiles contaminating the
    fused BN statistics).  Accounts for double buffering of the streamed
    columns and for the resident weight/bias/stat buffers.
    """
    avail = max(budget - resident_bytes, 2 * 1024 * 1024)
    cap = max(avail // (2 * max(bytes_per_col, 1)), 128)
    if m <= cap:
        return m                                  # single block, grid == 1
    t = (cap // 128) * 128
    while t >= 128:
        if m % t == 0:
            return t
        t -= 128
    return m                                      # fallback: full extent


# ---------------------------------------------------------------------------
# Kernel 1: transposed im2col-GEMM  (Cout, Kd) @ (Kd, TM)  + bias
#           (+ optional activation, + optional per-block BN partial stats)
# ---------------------------------------------------------------------------
def _conv_gemm_kernel(p_ref, w_ref, b_ref, o_ref, *stat_refs, act, fuse_stats):
    # w_ref: (TC, Kd) bf16   p_ref: (Kd, TM) bf16   b_ref: (TC, 1) f32
    # o_ref: (TC, TM) out dtype (lane-dense: M on the lane axis)
    # stat_refs: two (TC, 128) f32 per-block partial-stat slabs
    y = jnp.dot(w_ref[...], p_ref[...], preferred_element_type=jnp.float32)
    y = y + b_ref[...]
    if fuse_stats:
        sum_ref, ssq_ref = stat_refs
        s = jnp.sum(y, axis=1, keepdims=True)          # (TC, 1) f32
        q = jnp.sum(y * y, axis=1, keepdims=True)
        # Lane-broadcast so the partial-stat block is (TC, 128) -> legal and
        # lane-dense; reduced cheaply in JAX.  Keeps every grid axis parallel.
        sum_ref[...] = jnp.broadcast_to(s, sum_ref.shape)
        ssq_ref[...] = jnp.broadcast_to(q, ssq_ref.shape)
    if act == "relu":
        y = jnp.maximum(y, 0.0)
    elif act == "sigmoid":
        y = jax.nn.sigmoid(y)
    o_ref[...] = y.astype(o_ref.dtype)


def conv_gemm(patches, w_mat, bias, *, act=None, fuse_stats=False,
              out_dtype=jnp.bfloat16):
    """(Cout, Kd) bf16 @ (Kd, M) bf16 -> (Cout, M) out_dtype (+ partial stats)."""
    kd, m = patches.shape
    cout = w_mat.shape[0]
    tc = _choose_tile_c(cout)
    grid_c = cout // tc
    out_b = jnp.dtype(out_dtype).itemsize
    bytes_per_col = kd * 2 + tc * (out_b + 4)          # patch + out + f32 acc
    resident = tc * kd * 2 + tc * 4 + 4 * tc * 128 * 4 # weight + bias + stats
    tm = _choose_tile_m(m, bytes_per_col, resident)
    grid_m = m // tm

    patch_kwargs = {}
    if grid_m >= 4:
        # Deeper pipelining on the streamed patch input (hides DMA latency on
        # long, mem-bound M grids); no-op for the tiny demo shapes.
        patch_kwargs["pipeline_mode"] = pl.Buffered(3)

    in_specs = [
        pl.BlockSpec((kd, tm), lambda j, i: (0, i), **patch_kwargs),  # streamed
        pl.BlockSpec((tc, kd), lambda j, i: (j, 0)),                  # weight
        pl.BlockSpec((tc, 1), lambda j, i: (j, 0)),                   # bias
    ]
    out_spec_y = pl.BlockSpec((tc, tm), lambda j, i: (j, i))
    if fuse_stats:
        out_shape = (jax.ShapeDtypeStruct((cout, m), out_dtype),
                     jax.ShapeDtypeStruct((cout, grid_m * 128), jnp.float32),
                     jax.ShapeDtypeStruct((cout, grid_m * 128), jnp.float32))
        out_specs = (out_spec_y,
                     pl.BlockSpec((tc, 128), lambda j, i: (j, i)),
                     pl.BlockSpec((tc, 128), lambda j, i: (j, i)))
    else:
        out_shape = jax.ShapeDtypeStruct((cout, m), out_dtype)
        out_specs = out_spec_y

    return pl.pallas_call(
        functools.partial(_conv_gemm_kernel, act=act, fuse_stats=fuse_stats),
        out_shape=out_shape,
        grid=(grid_c, grid_m),
        in_specs=in_specs,
        out_specs=out_specs,
        compiler_params=pltpu.CompilerParams(
            dimension_semantics=("parallel", "parallel"),
            vmem_limit_bytes=VMEM_LIMIT),
    )(patches, w_mat, bias)


# ---------------------------------------------------------------------------
# Kernel 2: standalone per-block BN partial stats (for ConvT blocks, where the
#           statistics must be taken after the sub-pixel interleave)
# ---------------------------------------------------------------------------
def _bn_stats_kernel(x_ref, sum_ref, ssq_ref):
    x = x_ref[...].astype(jnp.float32)
    s = jnp.sum(x, axis=1, keepdims=True)
    q = jnp.sum(x * x, axis=1, keepdims=True)
    sum_ref[...] = jnp.broadcast_to(s, sum_ref.shape)
    ssq_ref[...] = jnp.broadcast_to(q, ssq_ref.shape)


def bn_stats(x):
    c, m = x.shape
    tm = _choose_tile_m(m, c * (x.dtype.itemsize + 4), 4 * c * 128 * 4)
    grid_m = m // tm
    return pl.pallas_call(
        _bn_stats_kernel,
        out_shape=(jax.ShapeDtypeStruct((c, grid_m * 128), jnp.float32),
                   jax.ShapeDtypeStruct((c, grid_m * 128), jnp.float32)),
        grid=(grid_m,),
        in_specs=[pl.BlockSpec((c, tm), lambda i: (0, i))],
        out_specs=(pl.BlockSpec((c, 128), lambda i: (0, i)),
                   pl.BlockSpec((c, 128), lambda i: (0, i))),
        compiler_params=pltpu.CompilerParams(
            dimension_semantics=("parallel",), vmem_limit_bytes=VMEM_LIMIT),
    )(x)


# ---------------------------------------------------------------------------
# Kernel 3: per-channel scale/shift (= BatchNorm apply) + activation
# ---------------------------------------------------------------------------
def _scale_shift_act_kernel(x_ref, sc_ref, sh_ref, o_ref, *, act):
    y = x_ref[...].astype(jnp.float32) * sc_ref[...] + sh_ref[...]
    if act == "relu":
        y = jnp.maximum(y, 0.0)
    elif act == "sigmoid":
        y = jax.nn.sigmoid(y)
    o_ref[...] = y.astype(o_ref.dtype)


def scale_shift_act(x, scale, shift, *, act, out_dtype=jnp.bfloat16):
    c, m = x.shape
    per_col = c * (x.dtype.itemsize + jnp.dtype(out_dtype).itemsize + 4)
    tm = _choose_tile_m(m, per_col, 2 * c * 4)
    grid_m = m // tm
    return pl.pallas_call(
        functools.partial(_scale_shift_act_kernel, act=act),
        out_shape=jax.ShapeDtypeStruct((c, m), out_dtype),
        grid=(grid_m,),
        in_specs=[pl.BlockSpec((c, tm), lambda i: (0, i)),
                  pl.BlockSpec((c, 1), lambda i: (0, 0)),
                  pl.BlockSpec((c, 1), lambda i: (0, 0))],
        out_specs=pl.BlockSpec((c, tm), lambda i: (0, i)),
        compiler_params=pltpu.CompilerParams(
            dimension_semantics=("parallel",), vmem_limit_bytes=VMEM_LIMIT),
    )(x, scale, shift)


# ---------------------------------------------------------------------------
# BN stat folding (JAX glue, tiny)
# ---------------------------------------------------------------------------
def _reduce_partial(ps):
    # Every 128-lane block holds the same per-block partial value -> take one
    # lane per block and sum across blocks.
    return ps[:, ::128].sum(axis=1, keepdims=True)


def _bn_scale_shift(s, ssq, m, gamma, beta):
    """Training-mode BN: fold exact batch stats into per-channel scale/shift."""
    mean = s / m
    var = jnp.maximum(ssq / m - mean * mean, 0.0)
    scale = gamma * jax.lax.rsqrt(var + EPS)
    shift = beta - mean * scale
    return scale, shift


# ---------------------------------------------------------------------------
# Glue: channel-major im2col + conv / transposed-conv blocks
# ---------------------------------------------------------------------------
def _im2col_cm(x_cm, n, h, w, k, stride, pad):
    """(C, N*H*W) -> (k*k*C, N*Ho*Wo) bf16 patches, row order (kh, kw, c)."""
    c = x_cm.shape[0]
    x = x_cm.astype(jnp.bfloat16).reshape(c, n, h, w)
    xp = jnp.pad(x, ((0, 0), (0, 0), (pad, pad), (pad, pad)))
    ho = (h + 2 * pad - k) // stride + 1
    wo = (w + 2 * pad - k) // stride + 1
    taps = []
    for kh in range(k):
        for kw in range(k):
            taps.append(xp[:, :, kh:kh + stride * ho:stride,
                           kw:kw + stride * wo:stride])
    patches = jnp.stack(taps, axis=0).reshape(k * k * c, n * ho * wo)
    return patches, ho, wo


def conv_block(x_cm, nhw, p, *, k, stride, pad, use_bn=True, act="relu",
               out_dtype=jnp.bfloat16):
    n, h, w = nhw
    patches, ho, wo = _im2col_cm(x_cm, n, h, w, k, stride, pad)
    m = n * ho * wo
    if use_bn:
        # conv + bias with fused per-block partial stats, then exact BN + act.
        y, ps, pq = conv_gemm(patches, p["w_mat"], p["bias"],
                              act=None, fuse_stats=True, out_dtype=jnp.bfloat16)
        scale, shift = _bn_scale_shift(_reduce_partial(ps), _reduce_partial(pq),
                                       m, p["gamma"], p["beta"])
        y = scale_shift_act(y, scale, shift, act=act, out_dtype=out_dtype)
    else:
        y = conv_gemm(patches, p["w_mat"], p["bias"], act=act,
                      fuse_stats=False, out_dtype=out_dtype)
    return y, (n, ho, wo)


def convT_block(x_cm, nhw, p, *, act="relu"):
    """ConvTranspose2d(k=4, s=2, p=1) + BN + act via sub-pixel decomposition."""
    n, h, w = nhw
    cout = p["gamma"].shape[0]
    # One stride-1 2x2 conv over the 1-padded input produces all 4 sub-pixel
    # phases as 4*cout output channels (no zero-dilated tensor, no zero taps).
    patches, ho, wo = _im2col_cm(x_cm, n, h, w, 2, 1, 1)     # ho=h+1, wo=w+1
    y = conv_gemm(patches, p["w_mat"], p["bias"], act=None,
                  fuse_stats=False, out_dtype=jnp.bfloat16)
    y = y.reshape(2, 2, cout, n, ho, wo)                     # (rh, rw, co, n, i, j)
    # out[co, n, 2i+rh, 2j+rw] = y[rh, rw, co, n, i+rh, j+rw]
    rows = []
    for rh in range(2):
        cols = [y[rh, rw, :, :, rh:rh + h, rw:rw + w] for rw in range(2)]
        rows.append(jnp.stack(cols, axis=-1).reshape(cout, n, h, 2 * w))
    z = jnp.stack(rows, axis=-2).reshape(cout, n, 2 * h, 2 * w)
    z_cm = z.reshape(cout, n * 2 * h * 2 * w)
    # Exact training-mode BN over the real (interleaved) output positions.
    ps, pq = bn_stats(z_cm)
    scale, shift = _bn_scale_shift(_reduce_partial(ps), _reduce_partial(pq),
                                   z_cm.shape[1], p["gamma"], p["beta"])
    out = scale_shift_act(z_cm, scale, shift, act=act, out_dtype=jnp.bfloat16)
    return out, (n, 2 * h, 2 * w)


# ---------------------------------------------------------------------------
# Deterministic parameter init (PyTorch layouts) + one-time GEMM prep
# ---------------------------------------------------------------------------
def _conv_params(key, cin, cout, k, bn=True):
    k1, k2, k3, k4 = jax.random.split(key, 4)
    scale = 1.0 / jnp.sqrt(cin * k * k)
    p = {"w": scale * jax.random.normal(k1, (cout, cin, k, k), jnp.float32),
         "b": 0.05 * jax.random.normal(k2, (cout,), jnp.float32)}
    if bn:
        p["gamma"] = 1.0 + 0.1 * jax.random.normal(k3, (cout,), jnp.float32)
        p["beta"] = 0.1 * jax.random.normal(k4, (cout,), jnp.float32)
    return p


def _convT_params(key, cin, cout, k):
    k1, k2, k3, k4 = jax.random.split(key, 4)
    scale = 1.0 / jnp.sqrt(cin * k * k)
    return {"w": scale * jax.random.normal(k1, (cin, cout, k, k), jnp.float32),
            "b": 0.05 * jax.random.normal(k2, (cout,), jnp.float32),
            "gamma": 1.0 + 0.1 * jax.random.normal(k3, (cout,), jnp.float32),
            "beta": 0.1 * jax.random.normal(k4, (cout,), jnp.float32)}


def init_unet_params(key, in_channels, nf, nb):
    keys = jax.random.split(key, 4 + 2 * nb)
    ki = iter(keys)
    return {
        "conv1": _conv_params(next(ki), in_channels, nf, 7),
        "down": [_conv_params(next(ki), nf * 2 ** i, nf * 2 ** (i + 1), 4)
                 for i in range(nb)],
        "bottleneck": _convT_params(next(ki), nf * 2 ** nb, nf * 2 ** (nb - 1), 4),
        "up": [_convT_params(next(ki), nf * 2 * 2 ** (i + 1), nf * 2 ** i, 4)
               for i in range(nb - 1)],
        "out1": _conv_params(next(ki), 2 * nf, nf, 3),
        "out2": _conv_params(next(ki), nf, 1, 3, bn=False),
    }


def _prep_conv(p, k, cin, cout, bn):
    # Conv2d weight (cout, cin, k, k) -> transposed-GEMM weight (cout, k*k*cin).
    w_t = jnp.transpose(p["w"], (0, 2, 3, 1)).reshape(cout, k * k * cin)
    out = {"w_mat": w_t.astype(jnp.bfloat16),
           "bias": p["b"].reshape(cout, 1).astype(jnp.float32)}
    if bn:
        out["gamma"] = p["gamma"].reshape(cout, 1).astype(jnp.float32)
        out["beta"] = p["beta"].reshape(cout, 1).astype(jnp.float32)
    return out


def _prep_convT(p, cin, cout):
    # ConvTranspose2d weight (cin, cout, 4, 4) -> transposed-GEMM weight of the
    # exact equivalent stride-1 2x2 conv producing the 4 sub-pixel phases:
    #   w_t[(rh*2+rw)*cout + co, (a*2+b)*cin + ci] = w[ci, co, 3-rh-2a, 3-rw-2b]
    wf = jnp.flip(p["w"], axis=(2, 3))                 # wf[..,j,l] = w[..,3-j,3-l]
    w6 = wf.reshape(cin, cout, 2, 2, 2, 2)             # (ci, co, a, rh, b, rw)
    w_t = jnp.transpose(w6, (3, 5, 1, 2, 4, 0)).reshape(4 * cout, 4 * cin)
    return {"w_mat": w_t.astype(jnp.bfloat16),
            "bias": jnp.tile(p["b"], 4).reshape(4 * cout, 1).astype(jnp.float32),
            "gamma": p["gamma"].reshape(cout, 1).astype(jnp.float32),
            "beta": p["beta"].reshape(cout, 1).astype(jnp.float32)}


def prepare_unet_params(raw, in_channels, nf, nb):
    return {
        "conv1": _prep_conv(raw["conv1"], 7, in_channels, nf, True),
        "down": [_prep_conv(raw["down"][i], 4, nf * 2 ** i, nf * 2 ** (i + 1), True)
                 for i in range(nb)],
        "bottleneck": _prep_convT(raw["bottleneck"], nf * 2 ** nb, nf * 2 ** (nb - 1)),
        "up": [_prep_convT(raw["up"][i], nf * 2 * 2 ** (i + 1), nf * 2 ** i)
               for i in range(nb - 1)],
        "out1": _prep_conv(raw["out1"], 3, 2 * nf, nf, True),
        "out2": _prep_conv(raw["out2"], 3, nf, 1, False),
    }


# ---------------------------------------------------------------------------
# UNet forward (mirrors the PyTorch module; NCHW in/out, (C, N*H*W) internally)
# ---------------------------------------------------------------------------
def unet_forward(x_nchw, params, *, nb):
    n, cin, h, w = x_nchw.shape
    # NCHW -> channel-major flattened (C, N*H*W), bf16 -- once, at the boundary.
    x = jnp.transpose(x_nchw, (1, 0, 2, 3)).reshape(cin, n * h * w)
    x = x.astype(jnp.bfloat16)
    shp = (n, h, w)

    x, shp = conv_block(x, shp, params["conv1"], k=7, stride=1, pad=3)
    skips = []
    for i in range(nb):
        skips.append((x, shp))
        x, shp = conv_block(x, shp, params["down"][i], k=4, stride=2, pad=1)
    x, shp = convT_block(x, shp, params["bottleneck"])
    for i in reversed(range(nb - 1)):
        sx, _ = skips[i + 1]
        # TODO(synk): fold the skip concat into the consumer GEMM (split-K /
        #             two patch inputs) instead of an HBM concat copy.
        x = jnp.concatenate([x, sx], axis=0)
        x, shp = convT_block(x, shp, params["up"][i])
    sx, _ = skips[0]
    x = jnp.concatenate([x, sx], axis=0)
    x, shp = conv_block(x, shp, params["out1"], k=3, stride=1, pad=1)
    x, shp = conv_block(x, shp, params["out2"], k=3, stride=1, pad=1,
                        use_bn=False, act="sigmoid", out_dtype=jnp.float32)

    n_, h_, w_ = shp
    return jnp.transpose(x.reshape(1, n_, h_, w_), (1, 0, 2, 3))  # back to NCHW


if __name__ == "__main__":
    # Small, module-consistent shapes: batch=2, in_channels=3, 16x16 spatial,
    # num_filters=4, num_blocks=2 (spatial must be divisible by 2**num_blocks).
    IN_CH, NF, NB = 3, 4, 2
    key = jax.random.PRNGKey(0)
    kx, kp = jax.random.split(key)
    x = jax.random.normal(kx, (2, IN_CH, 16, 16), jnp.float32)
    raw_params = init_unet_params(kp, IN_CH, NF, NB)
    params = prepare_unet_params(raw_params, IN_CH, NF, NB)  # hoisted weight prep

    fwd = jax.jit(functools.partial(unet_forward, nb=NB))
    out = jax.block_until_ready(fwd(x, params))

    assert out.shape == (2, 1, 16, 16), out.shape
    assert bool(jnp.all(jnp.isfinite(out)))
    assert bool(jnp.all((out >= 0.0) & (out <= 1.0)))  # sigmoid output
    print("KERNEL_OK")
</pallas_src>

<mosaic_0001>
module attributes {stable_mosaic.version = 11 : i64} {
  func.func @_conv_gemm_kernel(%arg0: i32, %arg1: i32, %arg2: memref<147x512xbf16, #tpu.memory_space<vmem>>, %arg3: memref<4x147xbf16, #tpu.memory_space<vmem>>, %arg4: memref<4x1xf32, #tpu.memory_space<vmem>>, %arg5: memref<4x512xbf16, #tpu.memory_space<vmem>>, %arg6: memref<4x128xf32, #tpu.memory_space<vmem>>, %arg7: memref<4x128xf32, #tpu.memory_space<vmem>>) attributes {dimension_semantics = [#tpu.dimension_semantics<parallel>, #tpu.dimension_semantics<parallel>], iteration_bounds = array<i64: 1, 1>, scalar_prefetch = 0 : i64, scratch_operands = 0 : i64, tpu.core_type = #tpu.core_type<tc>, window_params = [{transform_indices = @transform_0, window_bounds = array<i64: 147, 512>}, {transform_indices = @transform_1, window_bounds = array<i64: 4, 147>}, {transform_indices = @transform_2, window_bounds = array<i64: 4, 1>}, {transform_indices = @transform_3, window_bounds = array<i64: 4, 512>}, {transform_indices = @transform_4, window_bounds = array<i64: 4, 128>}, {transform_indices = @transform_5, window_bounds = array<i64: 4, 128>}]} {
    %c0 = arith.constant 0 : index
    %c0_0 = arith.constant 0 : index
    %0 = vector.load %arg3[%c0, %c0_0] : memref<4x147xbf16, #tpu.memory_space<vmem>>, vector<4x147xbf16>
    %c0_1 = arith.constant 0 : index
    %c0_2 = arith.constant 0 : index
    %1 = vector.load %arg2[%c0_1, %c0_2] : memref<147x512xbf16, #tpu.memory_space<vmem>>, vector<147x512xbf16>
    %cst = arith.constant dense<0.000000e+00> : vector<4x512xf32>
    %2 = tpu.matmul %0, %1, %cst {dimension_numbers = #tpu.dot_dimension_numbers<[1], [0], [0], [1], [0, 0, 1, 1], [], []>} : vector<4x147xbf16>, vector<147x512xbf16>, vector<4x512xf32> -> vector<4x512xf32>
    %c0_3 = arith.constant 0 : index
    %c0_4 = arith.constant 0 : index
    %3 = vector.load %arg4[%c0_3, %c0_4] : memref<4x1xf32, #tpu.memory_space<vmem>>, vector<4x1xf32>
    %4 = vector.broadcast %3 : vector<4x1xf32> to vector<4x512xf32>
    %5 = arith.addf %2, %4 : vector<4x512xf32>
    %cst_5 = arith.constant dense<0.000000e+00> : vector<4xf32>
    %6 = vector.multi_reduction <add>, %5, %cst_5 [1] : vector<4x512xf32> to vector<4xf32>
    %7 = vector.shape_cast %6 : vector<4xf32> to vector<4x1xf32>
    %8 = arith.mulf %5, %5 : vector<4x512xf32>
    %cst_6 = arith.constant dense<0.000000e+00> : vector<4xf32>
    %9 = vector.multi_reduction <add>, %8, %cst_6 [1] : vector<4x512xf32> to vector<4xf32>
    %10 = vector.shape_cast %9 : vector<4xf32> to vector<4x1xf32>
    %11 = vector.shape_cast %7 : vector<4x1xf32> to vector<4x1xf32>
    %12 = vector.broadcast %11 : vector<4x1xf32> to vector<4x128xf32>
    %c0_7 = arith.constant 0 : index
    %c0_8 = arith.constant 0 : index
    %13 = vector.load %arg6[%c0_7, %c0_8] : memref<4x128xf32, #tpu.memory_space<vmem>>, vector<4x128xf32>
    tpu.vector_store %arg6[%c0_7, %c0_8], %12 {strides = array<i32>} : memref<4x128xf32, #tpu.memory_space<vmem>>, vector<4x128xf32>,
    %14 = vector.shape_cast %10 : vector<4x1xf32> to vector<4x1xf32>
    %15 = vector.broadcast %14 : vector<4x1xf32> to vector<4x128xf32>
    %c0_9 = arith.constant 0 : index
    %c0_10 = arith.constant 0 : index
    %16 = vector.load %arg7[%c0_9, %c0_10] : memref<4x128xf32, #tpu.memory_space<vmem>>, vector<4x128xf32>
    tpu.vector_store %arg7[%c0_9, %c0_10], %15 {strides = array<i32>} : memref<4x128xf32, #tpu.memory_space<vmem>>, vector<4x128xf32>,
    %17 = arith.truncf %5 : vector<4x512xf32> to vector<4x512xbf16>
    %c0_11 = arith.constant 0 : index
    %c0_12 = arith.constant 0 : index
    %18 = vector.load %arg5[%c0_11, %c0_12] : memref<4x512xbf16, #tpu.memory_space<vmem>>, vector<4x512xbf16>
    tpu.vector_store %arg5[%c0_11, %c0_12], %17 {strides = array<i32>} : memref<4x512xbf16, #tpu.memory_space<vmem>>, vector<4x512xbf16>,
    return
  }
  func.func @transform_0(%arg0: i32, %arg1: i32) -> (i32, i32) {
    %c0_i32 = arith.constant 0 : i32
    %c0_i32_0 = arith.constant 0 : i32
    return %c0_i32, %arg1 : i32, i32
  }
  func.func @transform_1(%arg0: i32, %arg1: i32) -> (i32, i32) {
    %c0_i32 = arith.constant 0 : i32
    %c0_i32_0 = arith.constant 0 : i32
    return %arg0, %c0_i32 : i32, i32
  }
  func.func @transform_2(%arg0: i32, %arg1: i32) -> (i32, i32) {
    %c0_i32 = arith.constant 0 : i32
    %c0_i32_0 = arith.constant 0 : i32
    return %arg0, %c0_i32 : i32, i32
  }
  func.func @transform_3(%arg0: i32, %arg1: i32) -> (i32, i32) {
    %c0_i32 = arith.constant 0 : i32
    return %arg0, %arg1 : i32, i32
  }
  func.func @transform_4(%arg0: i32, %arg1: i32) -> (i32, i32) {
    %c0_i32 = arith.constant 0 : i32
    return %arg0, %arg1 : i32, i32
  }
  func.func @transform_5(%arg0: i32, %arg1: i32) -> (i32, i32) {
    %c0_i32 = arith.constant 0 : i32
    return %arg0, %arg1 : i32, i32
  }
}

module attributes {stable_mosaic.version = 11 : i64} {
  func.func @_scale_shift_act_kernel(%arg0: i32, %arg1: memref<4x512xbf16, #tpu.memory_space<vmem>>, %arg2: memref<4x1xf32, #tpu.memory_space<vmem>>, %arg3: memref<4x1xf32, #tpu.memory_space<vmem>>, %arg4: memref<4x512xbf16, #tpu.memory_space<vmem>>) attributes {dimension_semantics = [#tpu.dimension_semantics<parallel>], iteration_bounds = array<i64: 1>, scalar_prefetch = 0 : i64, scratch_operands = 0 : i64, tpu.core_type = #tpu.core_type<tc>, window_params = [{transform_indices = @transform_0, window_bounds = array<i64: 4, 512>}, {pipeline_mode = #tpu.pipeline_mode<synchronous>, transform_indices = @transform_1, window_bounds = array<i64: 4, 1>}, {pipeline_mode = #tpu.pipeline_mode<synchronous>, transform_indices = @transform_2, window_bounds = array<i64: 4, 1>}, {transform_indices = @transform_3, window_bounds = array<i64: 4, 512>}]} {
    %c0 = arith.constant 0 : index
    %c0_0 = arith.constant 0 : index
    %0 = vector.load %arg1[%c0, %c0_0] : memref<4x512xbf16, #tpu.memory_space<vmem>>, vector<4x512xbf16>
    %1 = arith.extf %0 : vector<4x512xbf16> to vector<4x512xf32>
    %c0_1 = arith.constant 0 : index
    %c0_2 = arith.constant 0 : index
    %2 = vector.load %arg2[%c0_1, %c0_2] : memref<4x1xf32, #tpu.memory_space<vmem>>, vector<4x1xf32>
    %3 = vector.broadcast %2 : vector<4x1xf32> to vector<4x512xf32>
    %4 = arith.mulf %1, %3 : vector<4x512xf32>
    %c0_3 = arith.constant 0 : index
    %c0_4 = arith.constant 0 : index
    %5 = vector.load %arg3[%c0_3, %c0_4] : memref<4x1xf32, #tpu.memory_space<vmem>>, vector<4x1xf32>
    %6 = vector.broadcast %5 : vector<4x1xf32> to vector<4x512xf32>
    %7 = arith.addf %4, %6 : vector<4x512xf32>
    %cst = arith.constant 0.000000e+00 : f32
    %8 = vector.broadcast %cst : f32 to vector<4x512xf32>
    %9 = arith.maximumf %7, %8 : vector<4x512xf32>
    %10 = arith.truncf %9 : vector<4x512xf32> to vector<4x512xbf16>
    %c0_5 = arith.constant 0 : index
    %c0_6 = arith.constant 0 : index
    %11 = vector.load %arg4[%c0_5, %c0_6] : memref<4x512xbf16, #tpu.memory_space<vmem>>, vector<4x512xbf16>
    tpu.vector_store %arg4[%c0_5, %c0_6], %10 {strides = array<i32>} : memref<4x512xbf16, #tpu.memory_space<vmem>>, vector<4x512xbf16>,
    return
  }
  func.func @transform_0(%arg0: i32) -> (i32, i32) {
    %c0_i32 = arith.constant 0 : i32
    %c0_i32_0 = arith.constant 0 : i32
    return %c0_i32, %arg0 : i32, i32
  }
  func.func @transform_1(%arg0: i32) -> (i32, i32) {
    %c0_i32 = arith.constant 0 : i32
    %c0_i32_0 = arith.constant 0 : i32
    %c0_i32_1 = arith.constant 0 : i32
    return %c0_i32, %c0_i32_0 : i32, i32
  }
  func.func @transform_2(%arg0: i32) -> (i32, i32) {
    %c0_i32 = arith.constant 0 : i32
    %c0_i32_0 = arith.constant 0 : i32
    %c0_i32_1 = arith.constant 0 : i32
    return %c0_i32, %c0_i32_0 : i32, i32
  }
  func.func @transform_3(%arg0: i32) -> (i32, i32) {
    %c0_i32 = arith.constant 0 : i32
    %c0_i32_0 = arith.constant 0 : i32
    return %c0_i32, %arg0 : i32, i32
  }
}

module attributes {stable_mosaic.version = 11 : i64} {
  func.func @_conv_gemm_kernel(%arg0: i32, %arg1: i32, %arg2: memref<64x128xbf16, #tpu.memory_space<vmem>>, %arg3: memref<8x64xbf16, #tpu.memory_space<vmem>>, %arg4: memref<8x1xf32, #tpu.memory_space<vmem>>, %arg5: memref<8x128xbf16, #tpu.memory_space<vmem>>, %arg6: memref<8x128xf32, #tpu.memory_space<vmem>>, %arg7: memref<8x128xf32, #tpu.memory_space<vmem>>) attributes {dimension_semantics = [#tpu.dimension_semantics<parallel>, #tpu.dimension_semantics<parallel>], iteration_bounds = array<i64: 1, 1>, scalar_prefetch = 0 : i64, scratch_operands = 0 : i64, tpu.core_type = #tpu.core_type<tc>, window_params = [{transform_indices = @transform_0, window_bounds = array<i64: 64, 128>}, {transform_indices = @transform_1, window_bounds = array<i64: 8, 64>}, {transform_indices = @transform_2, window_bounds = array<i64: 8, 1>}, {transform_indices = @transform_3, window_bounds = array<i64: 8, 128>}, {transform_indices = @transform_4, window_bounds = array<i64: 8, 128>}, {transform_indices = @transform_5, window_bounds = array<i64: 8, 128>}]} {
    %c0 = arith.constant 0 : index
    %c0_0 = arith.constant 0 : index
    %0 = vector.load %arg3[%c0, %c0_0] : memref<8x64xbf16, #tpu.memory_space<vmem>>, vector<8x64xbf16>
    %c0_1 = arith.constant 0 : index
    %c0_2 = arith.constant 0 : index
    %1 = vector.load %arg2[%c0_1, %c0_2] : memref<64x128xbf16, #tpu.memory_space<vmem>>, vector<64x128xbf16>
    %cst = arith.constant dense<0.000000e+00> : vector<8x128xf32>
    %2 = tpu.matmul %0, %1, %cst {dimension_numbers = #tpu.dot_dimension_numbers<[1], [0], [0], [1], [0, 0, 1, 1], [], []>} : vector<8x64xbf16>, vector<64x128xbf16>, vector<8x128xf32> -> vector<8x128xf32>
    %c0_3 = arith.constant 0 : index
    %c0_4 = arith.constant 0 : index
    %3 = vector.load %arg4[%c0_3, %c0_4] : memref<8x1xf32, #tpu.memory_space<vmem>>, vector<8x1xf32>
    %4 = vector.broadcast %3 : vector<8x1xf32> to vector<8x128xf32>
    %5 = arith.addf %2, %4 : vector<8x128xf32>
    %cst_5 = arith.constant dense<0.000000e+00> : vector<8xf32>
    %6 = vector.multi_reduction <add>, %5, %cst_5 [1] : vector<8x128xf32> to vector<8xf32>
    %7 = vector.shape_cast %6 : vector<8xf32> to vector<8x1xf32>
    %8 = arith.mulf %5, %5 : vector<8x128xf32>
    %cst_6 = arith.constant dense<0.000000e+00> : vector<8xf32>
    %9 = vector.multi_reduction <add>, %8, %cst_6 [1] : vector<8x128xf32> to vector<8xf32>
    %10 = vector.shape_cast %9 : vector<8xf32> to vector<8x1xf32>
    %11 = vector.shape_cast %7 : vector<8x1xf32> to vector<8x1xf32>
    %12 = vector.broadcast %11 : vector<8x1xf32> to vector<8x128xf32>
    %c0_7 = arith.constant 0 : index
    %c0_8 = arith.constant 0 : index
    %13 = vector.load %arg6[%c0_7, %c0_8] : memref<8x128xf32, #tpu.memory_space<vmem>>, vector<8x128xf32>
    tpu.vector_store %arg6[%c0_7, %c0_8], %12 {strides = array<i32>} : memref<8x128xf32, #tpu.memory_space<vmem>>, vector<8x128xf32>,
    %14 = vector.shape_cast %10 : vector<8x1xf32> to vector<8x1xf32>
    %15 = vector.broadcast %14 : vector<8x1xf32> to vector<8x128xf32>
    %c0_9 = arith.constant 0 : index
    %c0_10 = arith.constant 0 : index
    %16 = vector.load %arg7[%c0_9, %c0_10] : memref<8x128xf32, #tpu.memory_space<vmem>>, vector<8x128xf32>
    tpu.vector_store %arg7[%c0_9, %c0_10], %15 {strides = array<i32>} : memref<8x128xf32, #tpu.memory_space<vmem>>, vector<8x128xf32>,
    %17 = arith.truncf %5 : vector<8x128xf32> to vector<8x128xbf16>
    %c0_11 = arith.constant 0 : index
    %c0_12 = arith.constant 0 : index
    %18 = vector.load %arg5[%c0_11, %c0_12] : memref<8x128xbf16, #tpu.memory_space<vmem>>, vector<8x128xbf16>
    tpu.vector_store %arg5[%c0_11, %c0_12], %17 {strides = array<i32>} : memref<8x128xbf16, #tpu.memory_space<vmem>>, vector<8x128xbf16>,
    return
  }
  func.func @transform_0(%arg0: i32, %arg1: i32) -> (i32, i32) {
    %c0_i32 = arith.constant 0 : i32
    %c0_i32_0 = arith.constant 0 : i32
    return %c0_i32, %arg1 : i32, i32
  }
  func.func @transform_1(%arg0: i32, %arg1: i32) -> (i32, i32) {
    %c0_i32 = arith.constant 0 : i32
    %c0_i32_0 = arith.constant 0 : i32
    return %arg0, %c0_i32 : i32, i32
  }
  func.func @transform_2(%arg0: i32, %arg1: i32) -> (i32, i32) {
    %c0_i32 = arith.constant 0 : i32
    %c0_i32_0 = arith.constant 0 : i32
    return %arg0, %c0_i32 : i32, i32
  }
  func.func @transform_3(%arg0: i32, %arg1: i32) -> (i32, i32) {
    %c0_i32 = arith.constant 0 : i32
    return %arg0, %arg1 : i32, i32
  }
  func.func @transform_4(%arg0: i32, %arg1: i32) -> (i32, i32) {
    %c0_i32 = arith.constant 0 : i32
    return %arg0, %arg1 : i32, i32
  }
  func.func @transform_5(%arg0: i32, %arg1: i32) -> (i32, i32) {
    %c0_i32 = arith.constant 0 : i32
    return %arg0, %arg1 : i32, i32
  }
}

module attributes {stable_mosaic.version = 11 : i64} {
  func.func @_scale_shift_act_kernel(%arg0: i32, %arg1: memref<8x128xbf16, #tpu.memory_space<vmem>>, %arg2: memref<8x1xf32, #tpu.memory_space<vmem>>, %arg3: memref<8x1xf32, #tpu.memory_space<vmem>>, %arg4: memref<8x128xbf16, #tpu.memory_space<vmem>>) attributes {dimension_semantics = [#tpu.dimension_semantics<parallel>], iteration_bounds = array<i64: 1>, scalar_prefetch = 0 : i64, scratch_operands = 0 : i64, tpu.core_type = #tpu.core_type<tc>, window_params = [{transform_indices = @transform_0, window_bounds = array<i64: 8, 128>}, {pipeline_mode = #tpu.pipeline_mode<synchronous>, transform_indices = @transform_1, window_bounds = array<i64: 8, 1>}, {pipeline_mode = #tpu.pipeline_mode<synchronous>, transform_indices = @transform_2, window_bounds = array<i64: 8, 1>}, {transform_indices = @transform_3, window_bounds = array<i64: 8, 128>}]} {
    %c0 = arith.constant 0 : index
    %c0_0 = arith.constant 0 : index
    %0 = vector.load %arg1[%c0, %c0_0] : memref<8x128xbf16, #tpu.memory_space<vmem>>, vector<8x128xbf16>
    %1 = arith.extf %0 : vector<8x128xbf16> to vector<8x128xf32>
    %c0_1 = arith.constant 0 : index
    %c0_2 = arith.constant 0 : index
    %2 = vector.load %arg2[%c0_1, %c0_2] : memref<8x1xf32, #tpu.memory_space<vmem>>, vector<8x1xf32>
    %3 = vector.broadcast %2 : vector<8x1xf32> to vector<8x128xf32>
    %4 = arith.mulf %1, %3 : vector<8x128xf32>
    %c0_3 = arith.constant 0 : index
    %c0_4 = arith.constant 0 : index
    %5 = vector.load %arg3[%c0_3, %c0_4] : memref<8x1xf32, #tpu.memory_space<vmem>>, vector<8x1xf32>
    %6 = vector.broadcast %5 : vector<8x1xf32> to vector<8x128xf32>
    %7 = arith.addf %4, %6 : vector<8x128xf32>
    %cst = arith.constant 0.000000e+00 : f32
    %8 = vector.broadcast %cst : f32 to vector<8x128xf32>
    %9 = arith.maximumf %7, %8 : vector<8x128xf32>
    %10 = arith.truncf %9 : vector<8x128xf32> to vector<8x128xbf16>
    %c0_5 = arith.constant 0 : index
    %c0_6 = arith.constant 0 : index
    %11 = vector.load %arg4[%c0_5, %c0_6] : memref<8x128xbf16, #tpu.memory_space<vmem>>, vector<8x128xbf16>
    tpu.vector_store %arg4[%c0_5, %c0_6], %10 {strides = array<i32>} : memref<8x128xbf16, #tpu.memory_space<vmem>>, vector<8x128xbf16>,
    return
  }
  func.func @transform_0(%arg0: i32) -> (i32, i32) {
    %c0_i32 = arith.constant 0 : i32
    %c0_i32_0 = arith.constant 0 : i32
    return %c0_i32, %arg0 : i32, i32
  }
  func.func @transform_1(%arg0: i32) -> (i32, i32) {
    %c0_i32 = arith.constant 0 : i32
    %c0_i32_0 = arith.constant 0 : i32
    %c0_i32_1 = arith.constant 0 : i32
    return %c0_i32, %c0_i32_0 : i32, i32
  }
  func.func @transform_2(%arg0: i32) -> (i32, i32) {
    %c0_i32 = arith.constant 0 : i32
    %c0_i32_0 = arith.constant 0 : i32
    %c0_i32_1 = arith.constant 0 : i32
    return %c0_i32, %c0_i32_0 : i32, i32
  }
  func.func @transform_3(%arg0: i32) -> (i32, i32) {
    %c0_i32 = arith.constant 0 : i32
    %c0_i32_0 = arith.constant 0 : i32
    return %c0_i32, %arg0 : i32, i32
  }
}

module attributes {stable_mosaic.version = 11 : i64} {
  func.func @_scale_shift_act_kernel(%arg0: i32, %arg1: memref<16x32xbf16, #tpu.memory_space<vmem>>, %arg2: memref<16x1xf32, #tpu.memory_space<vmem>>, %arg3: memref<16x1xf32, #tpu.memory_space<vmem>>, %arg4: memref<16x32xbf16, #tpu.memory_space<vmem>>) attributes {dimension_semantics = [#tpu.dimension_semantics<parallel>], iteration_bounds = array<i64: 1>, scalar_prefetch = 0 : i64, scratch_operands = 0 : i64, tpu.core_type = #tpu.core_type<tc>, window_params = [{transform_indices = @transform_0, window_bounds = array<i64: 16, 32>}, {pipeline_mode = #tpu.pipeline_mode<synchronous>, transform_indices = @transform_1, window_bounds = array<i64: 16, 1>}, {pipeline_mode = #tpu.pipeline_mode<synchronous>, transform_indices = @transform_2, window_bounds = array<i64: 16, 1>}, {transform_indices = @transform_3, window_bounds = array<i64: 16, 32>}]} {
    %c0 = arith.constant 0 : index
    %c0_0 = arith.constant 0 : index
    %0 = vector.load %arg1[%c0, %c0_0] : memref<16x32xbf16, #tpu.memory_space<vmem>>, vector<16x32xbf16>
    %1 = arith.extf %0 : vector<16x32xbf16> to vector<16x32xf32>
    %c0_1 = arith.constant 0 : index
    %c0_2 = arith.constant 0 : index
    %2 = vector.load %arg2[%c0_1, %c0_2] : memref<16x1xf32, #tpu.memory_space<vmem>>, vector<16x1xf32>
    %3 = vector.broadcast %2 : vector<16x1xf32> to vector<16x32xf32>
    %4 = arith.mulf %1, %3 : vector<16x32xf32>
    %c0_3 = arith.constant 0 : index
    %c0_4 = arith.constant 0 : index
    %5 = vector.load %arg3[%c0_3, %c0_4] : memref<16x1xf32, #tpu.memory_space<vmem>>, vector<16x1xf32>
    %6 = vector.broadcast %5 : vector<16x1xf32> to vector<16x32xf32>
    %7 = arith.addf %4, %6 : vector<16x32xf32>
    %cst = arith.constant 0.000000e+00 : f32
    %8 = vector.broadcast %cst : f32 to vector<16x32xf32>
    %9 = arith.maximumf %7, %8 : vector<16x32xf32>
    %10 = arith.truncf %9 : vector<16x32xf32> to vector<16x32xbf16>
    %c0_5 = arith.constant 0 : index
    %c0_6 = arith.constant 0 : index
    %11 = vector.load %arg4[%c0_5, %c0_6] : memref<16x32xbf16, #tpu.memory_space<vmem>>, vector<16x32xbf16>
    tpu.vector_store %arg4[%c0_5, %c0_6], %10 {strides = array<i32>} : memref<16x32xbf16, #tpu.memory_space<vmem>>, vector<16x32xbf16>,
    return
  }
  func.func @transform_0(%arg0: i32) -> (i32, i32) {
    %c0_i32 = arith.constant 0 : i32
    %c0_i32_0 = arith.constant 0 : i32
    return %c0_i32, %arg0 : i32, i32
  }
  func.func @transform_1(%arg0: i32) -> (i32, i32) {
    %c0_i32 = arith.constant 0 : i32
    %c0_i32_0 = arith.constant 0 : i32
    %c0_i32_1 = arith.constant 0 : i32
    return %c0_i32, %c0_i32_0 : i32, i32
  }
  func.func @transform_2(%arg0: i32) -> (i32, i32) {
    %c0_i32 = arith.constant 0 : i32
    %c0_i32_0 = arith.constant 0 : i32
    %c0_i32_1 = arith.constant 0 : i32
    return %c0_i32, %c0_i32_0 : i32, i32
  }
  func.func @transform_3(%arg0: i32) -> (i32, i32) {
    %c0_i32 = arith.constant 0 : i32
    %c0_i32_0 = arith.constant 0 : i32
    return %c0_i32, %arg0 : i32, i32
  }
}

module attributes {stable_mosaic.version = 11 : i64} {
  func.func @_conv_gemm_kernel(%arg0: i32, %arg1: i32, %arg2: memref<128x32xbf16, #tpu.memory_space<vmem>>, %arg3: memref<16x128xbf16, #tpu.memory_space<vmem>>, %arg4: memref<16x1xf32, #tpu.memory_space<vmem>>, %arg5: memref<16x32xbf16, #tpu.memory_space<vmem>>, %arg6: memref<16x128xf32, #tpu.memory_space<vmem>>, %arg7: memref<16x128xf32, #tpu.memory_space<vmem>>) attributes {dimension_semantics = [#tpu.dimension_semantics<parallel>, #tpu.dimension_semantics<parallel>], iteration_bounds = array<i64: 1, 1>, scalar_prefetch = 0 : i64, scratch_operands = 0 : i64, tpu.core_type = #tpu.core_type<tc>, window_params = [{transform_indices = @transform_0, window_bounds = array<i64: 128, 32>}, {transform_indices = @transform_1, window_bounds = array<i64: 16, 128>}, {transform_indices = @transform_2, window_bounds = array<i64: 16, 1>}, {transform_indices = @transform_3, window_bounds = array<i64: 16, 32>}, {transform_indices = @transform_4, window_bounds = array<i64: 16, 128>}, {transform_indices = @transform_5, window_bounds = array<i64: 16, 128>}]} {
    %c0 = arith.constant 0 : index
    %c0_0 = arith.constant 0 : index
    %0 = vector.load %arg3[%c0, %c0_0] : memref<16x128xbf16, #tpu.memory_space<vmem>>, vector<16x128xbf16>
    %c0_1 = arith.constant 0 : index
    %c0_2 = arith.constant 0 : index
    %1 = vector.load %arg2[%c0_1, %c0_2] : memref<128x32xbf16, #tpu.memory_space<vmem>>, vector<128x32xbf16>
    %cst = arith.constant dense<0.000000e+00> : vector<16x32xf32>
    %2 = tpu.matmul %0, %1, %cst {dimension_numbers = #tpu.dot_dimension_numbers<[1], [0], [0], [1], [0, 0, 1, 1], [], []>} : vector<16x128xbf16>, vector<128x32xbf16>, vector<16x32xf32> -> vector<16x32xf32>
    %c0_3 = arith.constant 0 : index
    %c0_4 = arith.constant 0 : index
    %3 = vector.load %arg4[%c0_3, %c0_4] : memref<16x1xf32, #tpu.memory_space<vmem>>, vector<16x1xf32>
    %4 = vector.broadcast %3 : vector<16x1xf32> to vector<16x32xf32>
    %5 = arith.addf %2, %4 : vector<16x32xf32>
    %cst_5 = arith.constant dense<0.000000e+00> : vector<16xf32>
    %6 = vector.multi_reduction <add>, %5, %cst_5 [1] : vector<16x32xf32> to vector<16xf32>
    %7 = vector.shape_cast %6 : vector<16xf32> to vector<16x1xf32>
    %8 = arith.mulf %5, %5 : vector<16x32xf32>
    %cst_6 = arith.constant dense<0.000000e+00> : vector<16xf32>
    %9 = vector.multi_reduction <add>, %8, %cst_6 [1] : vector<16x32xf32> to vector<16xf32>
    %10 = vector.shape_cast %9 : vector<16xf32> to vector<16x1xf32>
    %11 = vector.shape_cast %7 : vector<16x1xf32> to vector<16x1xf32>
    %12 = vector.broadcast %11 : vector<16x1xf32> to vector<16x128xf32>
    %c0_7 = arith.constant 0 : index
    %c0_8 = arith.constant 0 : index
    %13 = vector.load %arg6[%c0_7, %c0_8] : memref<16x128xf32, #tpu.memory_space<vmem>>, vector<16x128xf32>
    tpu.vector_store %arg6[%c0_7, %c0_8], %12 {strides = array<i32>} : memref<16x128xf32, #tpu.memory_space<vmem>>, vector<16x128xf32>,
    %14 = vector.shape_cast %10 : vector<16x1xf32> to vector<16x1xf32>
    %15 = vector.broadcast %14 : vector<16x1xf32> to vector<16x128xf32>
    %c0_9 = arith.constant 0 : index
    %c0_10 = arith.constant 0 : index
    %16 = vector.load %arg7[%c0_9, %c0_10] : memref<16x128xf32, #tpu.memory_space<vmem>>, vector<16x128xf32>
    tpu.vector_store %arg7[%c0_9, %c0_10], %15 {strides = array<i32>} : memref<16x128xf32, #tpu.memory_space<vmem>>, vector<16x128xf32>,
    %17 = arith.truncf %5 : vector<16x32xf32> to vector<16x32xbf16>
    %c0_11 = arith.constant 0 : index
    %c0_12 = arith.constant 0 : index
    %18 = vector.load %arg5[%c0_11, %c0_12] : memref<16x32xbf16, #tpu.memory_space<vmem>>, vector<16x32xbf16>
    tpu.vector_store %arg5[%c0_11, %c0_12], %17 {strides = array<i32>} : memref<16x32xbf16, #tpu.memory_space<vmem>>, vector<16x32xbf16>,
    return
  }
  func.func @transform_0(%arg0: i32, %arg1: i32) -> (i32, i32) {
    %c0_i32 = arith.constant 0 : i32
    %c0_i32_0 = arith.constant 0 : i32
    return %c0_i32, %arg1 : i32, i32
  }
  func.func @transform_1(%arg0: i32, %arg1: i32) -> (i32, i32) {
    %c0_i32 = arith.constant 0 : i32
    %c0_i32_0 = arith.constant 0 : i32
    return %arg0, %c0_i32 : i32, i32
  }
  func.func @transform_2(%arg0: i32, %arg1: i32) -> (i32, i32) {
    %c0_i32 = arith.constant 0 : i32
    %c0_i32_0 = arith.constant 0 : i32
    return %arg0, %c0_i32 : i32, i32
  }
  func.func @transform_3(%arg0: i32, %arg1: i32) -> (i32, i32) {
    %c0_i32 = arith.constant 0 : i32
    return %arg0, %arg1 : i32, i32
  }
  func.func @transform_4(%arg0: i32, %arg1: i32) -> (i32, i32) {
    %c0_i32 = arith.constant 0 : i32
    return %arg0, %arg1 : i32, i32
  }
  func.func @transform_5(%arg0: i32, %arg1: i32) -> (i32, i32) {
    %c0_i32 = arith.constant 0 : i32
    return %arg0, %arg1 : i32, i32
  }
}

module attributes {stable_mosaic.version = 11 : i64} {
  func.func @_conv_gemm_kernel(%arg0: i32, %arg1: i32, %arg2: memref<64x50xbf16, #tpu.memory_space<vmem>>, %arg3: memref<32x64xbf16, #tpu.memory_space<vmem>>, %arg4: memref<32x1xf32, #tpu.memory_space<vmem>>, %arg5: memref<32x50xbf16, #tpu.memory_space<vmem>>) attributes {dimension_semantics = [#tpu.dimension_semantics<parallel>, #tpu.dimension_semantics<parallel>], iteration_bounds = array<i64: 1, 1>, scalar_prefetch = 0 : i64, scratch_operands = 0 : i64, tpu.core_type = #tpu.core_type<tc>, window_params = [{transform_indices = @transform_0, window_bounds = array<i64: 64, 50>}, {transform_indices = @transform_1, window_bounds = array<i64: 32, 64>}, {transform_indices = @transform_2, window_bounds = array<i64: 32, 1>}, {transform_indices = @transform_3, window_bounds = array<i64: 32, 50>}]} {
    %c0 = arith.constant 0 : index
    %c0_0 = arith.constant 0 : index
    %0 = vector.load %arg3[%c0, %c0_0] : memref<32x64xbf16, #tpu.memory_space<vmem>>, vector<32x64xbf16>
    %c0_1 = arith.constant 0 : index
    %c0_2 = arith.constant 0 : index
    %1 = vector.load %arg2[%c0_1, %c0_2] : memref<64x50xbf16, #tpu.memory_space<vmem>>, vector<64x50xbf16>
    %cst = arith.constant dense<0.000000e+00> : vector<32x50xf32>
    %2 = tpu.matmul %0, %1, %cst {dimension_numbers = #tpu.dot_dimension_numbers<[1], [0], [0], [1], [0, 0, 1, 1], [], []>} : vector<32x64xbf16>, vector<64x50xbf16>, vector<32x50xf32> -> vector<32x50xf32>
    %c0_3 = arith.constant 0 : index
    %c0_4 = arith.constant 0 : index
    %3 = vector.load %arg4[%c0_3, %c0_4] : memref<32x1xf32, #tpu.memory_space<vmem>>, vector<32x1xf32>
    %4 = vector.broadcast %3 : vector<32x1xf32> to vector<32x50xf32>
    %5 = arith.addf %2, %4 : vector<32x50xf32>
    %6 = arith.truncf %5 : vector<32x50xf32> to vector<32x50xbf16>
    %c0_5 = arith.constant 0 : index
    %c0_6 = arith.constant 0 : index
    %7 = vector.load %arg5[%c0_5, %c0_6] : memref<32x50xbf16, #tpu.memory_space<vmem>>, vector<32x50xbf16>
    tpu.vector_store %arg5[%c0_5, %c0_6], %6 {strides = array<i32>} : memref<32x50xbf16, #tpu.memory_space<vmem>>, vector<32x50xbf16>,
    return
  }
  func.func @transform_0(%arg0: i32, %arg1: i32) -> (i32, i32) {
    %c0_i32 = arith.constant 0 : i32
    %c0_i32_0 = arith.constant 0 : i32
    return %c0_i32, %arg1 : i32, i32
  }
  func.func @transform_1(%arg0: i32, %arg1: i32) -> (i32, i32) {
    %c0_i32 = arith.constant 0 : i32
    %c0_i32_0 = arith.constant 0 : i32
    return %arg0, %c0_i32 : i32, i32
  }
  func.func @transform_2(%arg0: i32, %arg1: i32) -> (i32, i32) {
    %c0_i32 = arith.constant 0 : i32
    %c0_i32_0 = arith.constant 0 : i32
    return %arg0, %c0_i32 : i32, i32
  }
  func.func @transform_3(%arg0: i32, %arg1: i32) -> (i32, i32) {
    %c0_i32 = arith.constant 0 : i32
    return %arg0, %arg1 : i32, i32
  }
}

module attributes {stable_mosaic.version = 11 : i64} {
  func.func @_bn_stats_kernel(%arg0: i32, %arg1: memref<8x128xbf16, #tpu.memory_space<vmem>>, %arg2: memref<8x128xf32, #tpu.memory_space<vmem>>, %arg3: memref<8x128xf32, #tpu.memory_space<vmem>>) attributes {dimension_semantics = [#tpu.dimension_semantics<parallel>], iteration_bounds = array<i64: 1>, scalar_prefetch = 0 : i64, scratch_operands = 0 : i64, tpu.core_type = #tpu.core_type<tc>, window_params = [{transform_indices = @transform_0, window_bounds = array<i64: 8, 128>}, {transform_indices = @transform_1, window_bounds = array<i64: 8, 128>}, {transform_indices = @transform_2, window_bounds = array<i64: 8, 128>}]} {
    %c0 = arith.constant 0 : index
    %c0_0 = arith.constant 0 : index
    %0 = vector.load %arg1[%c0, %c0_0] : memref<8x128xbf16, #tpu.memory_space<vmem>>, vector<8x128xbf16>
    %1 = arith.extf %0 : vector<8x128xbf16> to vector<8x128xf32>
    %cst = arith.constant dense<0.000000e+00> : vector<8xf32>
    %2 = vector.multi_reduction <add>, %1, %cst [1] : vector<8x128xf32> to vector<8xf32>
    %3 = vector.shape_cast %2 : vector<8xf32> to vector<8x1xf32>
    %4 = arith.mulf %1, %1 : vector<8x128xf32>
    %cst_1 = arith.constant dense<0.000000e+00> : vector<8xf32>
    %5 = vector.multi_reduction <add>, %4, %cst_1 [1] : vector<8x128xf32> to vector<8xf32>
    %6 = vector.shape_cast %5 : vector<8xf32> to vector<8x1xf32>
    %7 = vector.shape_cast %3 : vector<8x1xf32> to vector<8x1xf32>
    %8 = vector.broadcast %7 : vector<8x1xf32> to vector<8x128xf32>
    %c0_2 = arith.constant 0 : index
    %c0_3 = arith.constant 0 : index
    %9 = vector.load %arg2[%c0_2, %c0_3] : memref<8x128xf32, #tpu.memory_space<vmem>>, vector<8x128xf32>
    tpu.vector_store %arg2[%c0_2, %c0_3], %8 {strides = array<i32>} : memref<8x128xf32, #tpu.memory_space<vmem>>, vector<8x128xf32>,
    %10 = vector.shape_cast %6 : vector<8x1xf32> to vector<8x1xf32>
    %11 = vector.broadcast %10 : vector<8x1xf32> to vector<8x128xf32>
    %c0_4 = arith.constant 0 : index
    %c0_5 = arith.constant 0 : index
    %12 = vector.load %arg3[%c0_4, %c0_5] : memref<8x128xf32, #tpu.memory_space<vmem>>, vector<8x128xf32>
    tpu.vector_store %arg3[%c0_4, %c0_5], %11 {strides = array<i32>} : memref<8x128xf32, #tpu.memory_space<vmem>>, vector<8x128xf32>,
    return
  }
  func.func @transform_0(%arg0: i32) -> (i32, i32) {
    %c0_i32 = arith.constant 0 : i32
    %c0_i32_0 = arith.constant 0 : i32
    return %c0_i32, %arg0 : i32, i32
  }
  func.func @transform_1(%arg0: i32) -> (i32, i32) {
    %c0_i32 = arith.constant 0 : i32
    %c0_i32_0 = arith.constant 0 : i32
    return %c0_i32, %arg0 : i32, i32
  }
  func.func @transform_2(%arg0: i32) -> (i32, i32) {
    %c0_i32 = arith.constant 0 : i32
    %c0_i32_0 = arith.constant 0 : i32
    return %c0_i32, %arg0 : i32, i32
  }
}

module attributes {stable_mosaic.version = 11 : i64} {
  func.func @_conv_gemm_kernel(%arg0: i32, %arg1: i32, %arg2: memref<64x162xbf16, #tpu.memory_space<vmem>>, %arg3: memref<16x64xbf16, #tpu.memory_space<vmem>>, %arg4: memref<16x1xf32, #tpu.memory_space<vmem>>, %arg5: memref<16x162xbf16, #tpu.memory_space<vmem>>) attributes {dimension_semantics = [#tpu.dimension_semantics<parallel>, #tpu.dimension_semantics<parallel>], iteration_bounds = array<i64: 1, 1>, scalar_prefetch = 0 : i64, scratch_operands = 0 : i64, tpu.core_type = #tpu.core_type<tc>, window_params = [{transform_indices = @transform_0, window_bounds = array<i64: 64, 162>}, {transform_indices = @transform_1, window_bounds = array<i64: 16, 64>}, {transform_indices = @transform_2, window_bounds = array<i64: 16, 1>}, {transform_indices = @transform_3, window_bounds = array<i64: 16, 162>}]} {
    %c0 = arith.constant 0 : index
    %c0_0 = arith.constant 0 : index
    %0 = vector.load %arg3[%c0, %c0_0] : memref<16x64xbf16, #tpu.memory_space<vmem>>, vector<16x64xbf16>
    %c0_1 = arith.constant 0 : index
    %c0_2 = arith.constant 0 : index
    %1 = vector.load %arg2[%c0_1, %c0_2] : memref<64x162xbf16, #tpu.memory_space<vmem>>, vector<64x162xbf16>
    %cst = arith.constant dense<0.000000e+00> : vector<16x162xf32>
    %2 = tpu.matmul %0, %1, %cst {dimension_numbers = #tpu.dot_dimension_numbers<[1], [0], [0], [1], [0, 0, 1, 1], [], []>} : vector<16x64xbf16>, vector<64x162xbf16>, vector<16x162xf32> -> vector<16x162xf32>
    %c0_3 = arith.constant 0 : index
    %c0_4 = arith.constant 0 : index
    %3 = vector.load %arg4[%c0_3, %c0_4] : memref<16x1xf32, #tpu.memory_space<vmem>>, vector<16x1xf32>
    %4 = vector.broadcast %3 : vector<16x1xf32> to vector<16x162xf32>
    %5 = arith.addf %2, %4 : vector<16x162xf32>
    %6 = arith.truncf %5 : vector<16x162xf32> to vector<16x162xbf16>
    %c0_5 = arith.constant 0 : index
    %c0_6 = arith.constant 0 : index
    %7 = vector.load %arg5[%c0_5, %c0_6] : memref<16x162xbf16, #tpu.memory_space<vmem>>, vector<16x162xbf16>
    tpu.vector_store %arg5[%c0_5, %c0_6], %6 {strides = array<i32>} : memref<16x162xbf16, #tpu.memory_space<vmem>>, vector<16x162xbf16>,
    return
  }
  func.func @transform_0(%arg0: i32, %arg1: i32) -> (i32, i32) {
    %c0_i32 = arith.constant 0 : i32
    %c0_i32_0 = arith.constant 0 : i32
    return %c0_i32, %arg1 : i32, i32
  }
  func.func @transform_1(%arg0: i32, %arg1: i32) -> (i32, i32) {
    %c0_i32 = arith.constant 0 : i32
    %c0_i32_0 = arith.constant 0 : i32
    return %arg0, %c0_i32 : i32, i32
  }
  func.func @transform_2(%arg0: i32, %arg1: i32) -> (i32, i32) {
    %c0_i32 = arith.constant 0 : i32
    %c0_i32_0 = arith.constant 0 : i32
    return %arg0, %c0_i32 : i32, i32
  }
  func.func @transform_3(%arg0: i32, %arg1: i32) -> (i32, i32) {
    %c0_i32 = arith.constant 0 : i32
    return %arg0, %arg1 : i32, i32
  }
}

module attributes {stable_mosaic.version = 11 : i64} {
  func.func @_bn_stats_kernel(%arg0: i32, %arg1: memref<4x512xbf16, #tpu.memory_space<vmem>>, %arg2: memref<4x128xf32, #tpu.memory_space<vmem>>, %arg3: memref<4x128xf32, #tpu.memory_space<vmem>>) attributes {dimension_semantics = [#tpu.dimension_semantics<parallel>], iteration_bounds = array<i64: 1>, scalar_prefetch = 0 : i64, scratch_operands = 0 : i64, tpu.core_type = #tpu.core_type<tc>, window_params = [{transform_indices = @transform_0, window_bounds = array<i64: 4, 512>}, {transform_indices = @transform_1, window_bounds = array<i64: 4, 128>}, {transform_indices = @transform_2, window_bounds = array<i64: 4, 128>}]} {
    %c0 = arith.constant 0 : index
    %c0_0 = arith.constant 0 : index
    %0 = vector.load %arg1[%c0, %c0_0] : memref<4x512xbf16, #tpu.memory_space<vmem>>, vector<4x512xbf16>
    %1 = arith.extf %0 : vector<4x512xbf16> to vector<4x512xf32>
    %cst = arith.constant dense<0.000000e+00> : vector<4xf32>
    %2 = vector.multi_reduction <add>, %1, %cst [1] : vector<4x512xf32> to vector<4xf32>
    %3 = vector.shape_cast %2 : vector<4xf32> to vector<4x1xf32>
    %4 = arith.mulf %1, %1 : vector<4x512xf32>
    %cst_1 = arith.constant dense<0.000000e+00> : vector<4xf32>
    %5 = vector.multi_reduction <add>, %4, %cst_1 [1] : vector<4x512xf32> to vector<4xf32>
    %6 = vector.shape_cast %5 : vector<4xf32> to vector<4x1xf32>
    %7 = vector.shape_cast %3 : vector<4x1xf32> to vector<4x1xf32>
    %8 = vector.broadcast %7 : vector<4x1xf32> to vector<4x128xf32>
    %c0_2 = arith.constant 0 : index
    %c0_3 = arith.constant 0 : index
    %9 = vector.load %arg2[%c0_2, %c0_3] : memref<4x128xf32, #tpu.memory_space<vmem>>, vector<4x128xf32>
    tpu.vector_store %arg2[%c0_2, %c0_3], %8 {strides = array<i32>} : memref<4x128xf32, #tpu.memory_space<vmem>>, vector<4x128xf32>,
    %10 = vector.shape_cast %6 : vector<4x1xf32> to vector<4x1xf32>
    %11 = vector.broadcast %10 : vector<4x1xf32> to vector<4x128xf32>
    %c0_4 = arith.constant 0 : index
    %c0_5 = arith.constant 0 : index
    %12 = vector.load %arg3[%c0_4, %c0_5] : memref<4x128xf32, #tpu.memory_space<vmem>>, vector<4x128xf32>
    tpu.vector_store %arg3[%c0_4, %c0_5], %11 {strides = array<i32>} : memref<4x128xf32, #tpu.memory_space<vmem>>, vector<4x128xf32>,
    return
  }
  func.func @transform_0(%arg0: i32) -> (i32, i32) {
    %c0_i32 = arith.constant 0 : i32
    %c0_i32_0 = arith.constant 0 : i32
    return %c0_i32, %arg0 : i32, i32
  }
  func.func @transform_1(%arg0: i32) -> (i32, i32) {
    %c0_i32 = arith.constant 0 : i32
    %c0_i32_0 = arith.constant 0 : i32
    return %c0_i32, %arg0 : i32, i32
  }
  func.func @transform_2(%arg0: i32) -> (i32, i32) {
    %c0_i32 = arith.constant 0 : i32
    %c0_i32_0 = arith.constant 0 : i32
    return %c0_i32, %arg0 : i32, i32
  }
}

module attributes {stable_mosaic.version = 11 : i64} {
  func.func @_conv_gemm_kernel(%arg0: i32, %arg1: i32, %arg2: memref<72x512xbf16, #tpu.memory_space<vmem>>, %arg3: memref<4x72xbf16, #tpu.memory_space<vmem>>, %arg4: memref<4x1xf32, #tpu.memory_space<vmem>>, %arg5: memref<4x512xbf16, #tpu.memory_space<vmem>>, %arg6: memref<4x128xf32, #tpu.memory_space<vmem>>, %arg7: memref<4x128xf32, #tpu.memory_space<vmem>>) attributes {dimension_semantics = [#tpu.dimension_semantics<parallel>, #tpu.dimension_semantics<parallel>], iteration_bounds = array<i64: 1, 1>, scalar_prefetch = 0 : i64, scratch_operands = 0 : i64, tpu.core_type = #tpu.core_type<tc>, window_params = [{transform_indices = @transform_0, window_bounds = array<i64: 72, 512>}, {transform_indices = @transform_1, window_bounds = array<i64: 4, 72>}, {transform_indices = @transform_2, window_bounds = array<i64: 4, 1>}, {transform_indices = @transform_3, window_bounds = array<i64: 4, 512>}, {transform_indices = @transform_4, window_bounds = array<i64: 4, 128>}, {transform_indices = @transform_5, window_bounds = array<i64: 4, 128>}]} {
    %c0 = arith.constant 0 : index
    %c0_0 = arith.constant 0 : index
    %0 = vector.load %arg3[%c0, %c0_0] : memref<4x72xbf16, #tpu.memory_space<vmem>>, vector<4x72xbf16>
    %c0_1 = arith.constant 0 : index
    %c0_2 = arith.constant 0 : index
    %1 = vector.load %arg2[%c0_1, %c0_2] : memref<72x512xbf16, #tpu.memory_space<vmem>>, vector<72x512xbf16>
    %cst = arith.constant dense<0.000000e+00> : vector<4x512xf32>
    %2 = tpu.matmul %0, %1, %cst {dimension_numbers = #tpu.dot_dimension_numbers<[1], [0], [0], [1], [0, 0, 1, 1], [], []>} : vector<4x72xbf16>, vector<72x512xbf16>, vector<4x512xf32> -> vector<4x512xf32>
    %c0_3 = arith.constant 0 : index
    %c0_4 = arith.constant 0 : index
    %3 = vector.load %arg4[%c0_3, %c0_4] : memref<4x1xf32, #tpu.memory_space<vmem>>, vector<4x1xf32>
    %4 = vector.broadcast %3 : vector<4x1xf32> to vector<4x512xf32>
    %5 = arith.addf %2, %4 : vector<4x512xf32>
    %cst_5 = arith.constant dense<0.000000e+00> : vector<4xf32>
    %6 = vector.multi_reduction <add>, %5, %cst_5 [1] : vector<4x512xf32> to vector<4xf32>
    %7 = vector.shape_cast %6 : vector<4xf32> to vector<4x1xf32>
    %8 = arith.mulf %5, %5 : vector<4x512xf32>
    %cst_6 = arith.constant dense<0.000000e+00> : vector<4xf32>
    %9 = vector.multi_reduction <add>, %8, %cst_6 [1] : vector<4x512xf32> to vector<4xf32>
    %10 = vector.shape_cast %9 : vector<4xf32> to vector<4x1xf32>
    %11 = vector.shape_cast %7 : vector<4x1xf32> to vector<4x1xf32>
    %12 = vector.broadcast %11 : vector<4x1xf32> to vector<4x128xf32>
    %c0_7 = arith.constant 0 : index
    %c0_8 = arith.constant 0 : index
    %13 = vector.load %arg6[%c0_7, %c0_8] : memref<4x128xf32, #tpu.memory_space<vmem>>, vector<4x128xf32>
    tpu.vector_store %arg6[%c0_7, %c0_8], %12 {strides = array<i32>} : memref<4x128xf32, #tpu.memory_space<vmem>>, vector<4x128xf32>,
    %14 = vector.shape_cast %10 : vector<4x1xf32> to vector<4x1xf32>
    %15 = vector.broadcast %14 : vector<4x1xf32> to vector<4x128xf32>
    %c0_9 = arith.constant 0 : index
    %c0_10 = arith.constant 0 : index
    %16 = vector.load %arg7[%c0_9, %c0_10] : memref<4x128xf32, #tpu.memory_space<vmem>>, vector<4x128xf32>
    tpu.vector_store %arg7[%c0_9, %c0_10], %15 {strides = array<i32>} : memref<4x128xf32, #tpu.memory_space<vmem>>, vector<4x128xf32>,
    %17 = arith.truncf %5 : vector<4x512xf32> to vector<4x512xbf16>
    %c0_11 = arith.constant 0 : index
    %c0_12 = arith.constant 0 : index
    %18 = vector.load %arg5[%c0_11, %c0_12] : memref<4x512xbf16, #tpu.memory_space<vmem>>, vector<4x512xbf16>
    tpu.vector_store %arg5[%c0_11, %c0_12], %17 {strides = array<i32>} : memref<4x512xbf16, #tpu.memory_space<vmem>>, vector<4x512xbf16>,
    return
  }
  func.func @transform_0(%arg0: i32, %arg1: i32) -> (i32, i32) {
    %c0_i32 = arith.constant 0 : i32
    %c0_i32_0 = arith.constant 0 : i32
    return %c0_i32, %arg1 : i32, i32
  }
  func.func @transform_1(%arg0: i32, %arg1: i32) -> (i32, i32) {
    %c0_i32 = arith.constant 0 : i32
    %c0_i32_0 = arith.constant 0 : i32
    return %arg0, %c0_i32 : i32, i32
  }
  func.func @transform_2(%arg0: i32, %arg1: i32) -> (i32, i32) {
    %c0_i32 = arith.constant 0 : i32
    %c0_i32_0 = arith.constant 0 : i32
    return %arg0, %c0_i32 : i32, i32
  }
  func.func @transform_3(%arg0: i32, %arg1: i32) -> (i32, i32) {
    %c0_i32 = arith.constant 0 : i32
    return %arg0, %arg1 : i32, i32
  }
  func.func @transform_4(%arg0: i32, %arg1: i32) -> (i32, i32) {
    %c0_i32 = arith.constant 0 : i32
    return %arg0, %arg1 : i32, i32
  }
  func.func @transform_5(%arg0: i32, %arg1: i32) -> (i32, i32) {
    %c0_i32 = arith.constant 0 : i32
    return %arg0, %arg1 : i32, i32
  }
}

module attributes {stable_mosaic.version = 11 : i64} {
  func.func @_conv_gemm_kernel(%arg0: i32, %arg1: i32, %arg2: memref<36x512xbf16, #tpu.memory_space<vmem>>, %arg3: memref<1x36xbf16, #tpu.memory_space<vmem>>, %arg4: memref<1x1xf32, #tpu.memory_space<vmem>>, %arg5: memref<1x512xf32, #tpu.memory_space<vmem>>) attributes {dimension_semantics = [#tpu.dimension_semantics<parallel>, #tpu.dimension_semantics<parallel>], iteration_bounds = array<i64: 1, 1>, scalar_prefetch = 0 : i64, scratch_operands = 0 : i64, tpu.core_type = #tpu.core_type<tc>, window_params = [{transform_indices = @transform_0, window_bounds = array<i64: 36, 512>}, {transform_indices = @transform_1, window_bounds = array<i64: 1, 36>}, {transform_indices = @transform_2, window_bounds = array<i64: 1, 1>}, {transform_indices = @transform_3, window_bounds = array<i64: 1, 512>}]} {
    %c0 = arith.constant 0 : index
    %c0_0 = arith.constant 0 : index
    %0 = vector.load %arg3[%c0, %c0_0] : memref<1x36xbf16, #tpu.memory_space<vmem>>, vector<1x36xbf16>
    %c0_1 = arith.constant 0 : index
    %c0_2 = arith.constant 0 : index
    %1 = vector.load %arg2[%c0_1, %c0_2] : memref<36x512xbf16, #tpu.memory_space<vmem>>, vector<36x512xbf16>
    %cst = arith.constant dense<0.000000e+00> : vector<1x512xf32>
    %2 = tpu.matmul %0, %1, %cst {dimension_numbers = #tpu.dot_dimension_numbers<[1], [0], [0], [1], [0, 0, 1, 1], [], []>} : vector<1x36xbf16>, vector<36x512xbf16>, vector<1x512xf32> -> vector<1x512xf32>
    %c0_3 = arith.constant 0 : index
    %c0_4 = arith.constant 0 : index
    %3 = vector.load %arg4[%c0_3, %c0_4] : memref<1x1xf32, #tpu.memory_space<vmem>>, vector<1x1xf32>
    %4 = vector.broadcast %3 : vector<1x1xf32> to vector<1x512xf32>
    %5 = arith.addf %2, %4 : vector<1x512xf32>
    %6 = arith.negf %5 : vector<1x512xf32>
    %7 = math.exp %6 : vector<1x512xf32>
    %cst_5 = arith.constant 1.000000e+00 : f32
    %8 = vector.broadcast %cst_5 : f32 to vector<1x512xf32>
    %9 = arith.addf %8, %7 : vector<1x512xf32>
    %10 = arith.divf %8, %9 : vector<1x512xf32>
    %c0_6 = arith.constant 0 : index
    %c0_7 = arith.constant 0 : index
    %11 = vector.load %arg5[%c0_6, %c0_7] : memref<1x512xf32, #tpu.memory_space<vmem>>, vector<1x512xf32>
    tpu.vector_store %arg5[%c0_6, %c0_7], %10 {strides = array<i32>} : memref<1x512xf32, #tpu.memory_space<vmem>>, vector<1x512xf32>,
    return
  }
  func.func @transform_0(%arg0: i32, %arg1: i32) -> (i32, i32) {
    %c0_i32 = arith.constant 0 : i32
    %c0_i32_0 = arith.constant 0 : i32
    return %c0_i32, %arg1 : i32, i32
  }
  func.func @transform_1(%arg0: i32, %arg1: i32) -> (i32, i32) {
    %c0_i32 = arith.constant 0 : i32
    %c0_i32_0 = arith.constant 0 : i32
    return %arg0, %c0_i32 : i32, i32
  }
  func.func @transform_2(%arg0: i32, %arg1: i32) -> (i32, i32) {
    %c0_i32 = arith.constant 0 : i32
    %c0_i32_0 = arith.constant 0 : i32
    return %arg0, %c0_i32 : i32, i32
  }
  func.func @transform_3(%arg0: i32, %arg1: i32) -> (i32, i32) {
    %c0_i32 = arith.constant 0 : i32
    return %arg0, %arg1 : i32, i32
  }
}

</mosaic_0001>

<llo_original>
// kernel: unet_forward.16
$region0: #{unet_forward.16}
  #allocation0 [shape = 'u32[]', space=smem, size = 0x4, offset = 0x4, fixed_abs, tag = 'smem constant byte address 0x4 - core index']
  #allocation1 [shape = 'u32[144,128]{1,0:T(1,128)}', space=vmem, size = 0x12000, scoped, tag = 'internal scratch']
  %s0 = inlined_call_operand.vmem [shape: bf16[4,512], index: 0, kind: input, shape index: {}]
  %s1 = inlined_call_operand.vmem [shape: f32[4,1], index: 1, kind: input, shape index: {}]
  %s2 = inlined_call_operand.vmem [shape: f32[4,1], index: 2, kind: input, shape index: {}]
  %s3 = inlined_call_operand.vmem [shape: bf16[4,512], index: 3, kind: output, shape index: {}]
  %s4 = sld [smem:[#allocation0]]
  $region22: #{unet_forward.16} parent=0
    _
  %s6 = ssub.s32 1, %s4
  %s7 = scalar_select 0, %s6, %s4
  // Predicated region
  $region2: #{unet_forward.16} parent=0 // pred_check
    _
  $region3: #{unet_forward.16} parent=0 // pred_check_branch
    %9 = sbr.rel (0) target = $region5
  $region4: #{unet_forward.16} parent=0 // pred_region
    _
  $region5: #{unet_forward.16} parent=0 // pred_fallthru
    _
  // Predicated region
  $region6: #{unet_forward.16} parent=0 // pred_check
    _
  $region7: #{unet_forward.16} parent=0 // pred_check_branch
    %11 = sbr.rel (0) target = $region9
  $region8: #{unet_forward.16} parent=0 // pred_region
    _
  $region9: #{unet_forward.16} parent=0 // pred_fallthru
    _
  // Predicated region
  $region10: #{unet_forward.16} parent=0 // pred_check
    _
  $region11: #{unet_forward.16} parent=0 // pred_check_branch
    %13 = sbr.rel (0) target = $region13
  $region12: #{unet_forward.16} parent=0 // pred_region
    _
  $region13: #{unet_forward.16} parent=0 // pred_fallthru
    _
  %v14 = vld [vmem:[%s0] sm:$0xff]
  %v15 = vunpack.c.l.bf16 %v14
  %v16 = vunpack.c.h.bf16 %v14
  %v17 = vld [vmem:[%s1] sm:$0xf]
  %19 = vset.pattern.permute.xlu0 0
  %20 = vperm.xlu0 %19, %v17
  %v21 = vpop.permute.xlu0 %20
  %v23 = vunpack.c.l.s4 839922192
  %v24 = vunpack.c.0.s8 %v23
  %v25 = vlaneseq
  %v26 = vshrl.u32 %v25, 7
  %v27 = vsub.s32 %v24, %v26
  %v28 = vrot.slane %v21, %v27
  %v30 = vmul.f32 %v15, %v28
  %v31 = vmul.f32 %v16, %v28
  %v32 = vld [vmem:[%s2] sm:$0xf]
  %34 = vset.pattern.permute.xlu0 0
  %35 = vperm.xlu0 %34, %v32
  %v36 = vpop.permute.xlu0 %35
  %v38 = vunpack.c.l.s4 839922192
  %v39 = vunpack.c.0.s8 %v38
  %v40 = vlaneseq
  %v41 = vshrl.u32 %v40, 7
  %v42 = vsub.s32 %v39, %v41
  %v43 = vrot.slane %v36, %v42
  %v45 = vadd.f32 %v30, %v43
  %v46 = vadd.f32 %v31, %v43
  %v47 = vmax.f32 %v45, 0.0
  %v48 = vmax.f32 %v46, 0.0
  %v51 = vcombine.high %v47, %v47
  %v52 = vcombine.high %v48, %v48
  %v55 = vpack.c.bf16 %v47, %v47
  %v56 = vpack.c.bf16 %v51, %v51
  %v57 = vpack.c.bf16 %v48, %v48
  %v58 = vpack.c.bf16 %v52, %v52
  %v63 = vcombine.low %v55, %v56
  %v64 = vcombine.low %v57, %v58
  %v66 = vunpack.c.l.s4 1983009808
  %v67 = vunpack.c.0.s8 %v66
  %v68 = vlaneseq
  %v69 = vshrl.u32 %v68, 7
  %v70 = vsub.s32 %v67, %v69
  %v71 = vrot.slane %v63, %v70
  %v73 = vunpack.c.l.s4 1983009808
  %v74 = vunpack.c.0.s8 %v73
  %v75 = vlaneseq
  %v76 = vshrl.u32 %v75, 7
  %v77 = vsub.s32 %v74, %v76
  %v78 = vrot.slane %v64, %v77
  %v79 = vcombine.low %v71, %v78
  %81 = vst [vmem:[%s3] sm:$0xff] %v79
  // Predicated region
  $region14: #{unet_forward.16} parent=0 // pred_check
    _
  $region15: #{unet_forward.16} parent=0 // pred_check_branch
    %83 = sbr.rel (0) target = $region17
  $region16: #{unet_forward.16} parent=0 // pred_region
    _
  $region17: #{unet_forward.16} parent=0 // pred_fallthru
    _
  // Predicated region
  $region18: #{unet_forward.16} parent=0 // pred_check
    _
  $region19: #{unet_forward.16} parent=0 // pred_check_branch
    %85 = sbr.rel (0) target = $region21
  $region20: #{unet_forward.16} parent=0 // pred_region
    _
  $region21: #{unet_forward.16} parent=0 // pred_fallthru
    _

// kernel: unet_forward.15
$region0: #{unet_forward.15}
  #allocation0 [shape = 'u32[]', space=smem, size = 0x4, offset = 0x4, fixed_abs, tag = 'smem constant byte address 0x4 - core index']
  #allocation1 [shape = 'u32[144,128]{1,0:T(1,128)}', space=vmem, size = 0x12000, scoped, tag = 'internal scratch']
  %s0 = inlined_call_operand.vmem [shape: bf16[147,512], index: 0, kind: input, shape index: {}]
  %s1 = inlined_call_operand.vmem [shape: bf16[4,147], index: 1, kind: input, shape index: {}]
  %s2 = inlined_call_operand.vmem [shape: f32[4,1], index: 2, kind: input, shape index: {}]
  %s3 = inlined_call_operand.vmem [shape: bf16[4,512], index: 3, kind: output, shape index: {0}]
  %s4 = inlined_call_operand.vmem [shape: f32[4,128], index: 4, kind: output, shape index: {1}]
  %s5 = inlined_call_operand.vmem [shape: f32[4,128], index: 5, kind: output, shape index: {2}]
  %6 = xla_tuple %s3, %s4, %s5
  %s7 = sld [smem:[#allocation0]]
  $region38: #{unet_forward.15} parent=0
    _
  %s9 = ssub.s32 1, %s7
  %s10 = scalar_select 0, %s9, %s7
  // Predicated region
  $region2: #{unet_forward.15} parent=0 // pred_check
    _
  $region3: #{unet_forward.15} parent=0 // pred_check_branch
    %12 = sbr.rel (0) target = $region5
  $region4: #{unet_forward.15} parent=0 // pred_region
    _
  $region5: #{unet_forward.15} parent=0 // pred_fallthru
    _
  // Predicated region
  $region6: #{unet_forward.15} parent=0 // pred_check
    _
  $region7: #{unet_forward.15} parent=0 // pred_check_branch
    %14 = sbr.rel (0) target = $region9
  $region8: #{unet_forward.15} parent=0 // pred_region
    _
  $region9: #{unet_forward.15} parent=0 // pred_fallthru
    _
  // Predicated region
  $region10: #{unet_forward.15} parent=0 // pred_check
    _
  $region11: #{unet_forward.15} parent=0 // pred_check_branch
    %16 = sbr.rel (0) target = $region13
  $region12: #{unet_forward.15} parent=0 // pred_region
    _
  $region13: #{unet_forward.15} parent=0 // pred_fallthru
    _
  %v18 = vld [vmem:[%s1] sm:$0xf]
  %v19 = vld [vmem:[%s0] sm:$0xff]
  %v20 = vld [vmem:[%s0 + $0x8] sm:$0xff]
  %v21 = vld [vmem:[%s0 + $0x10] sm:$0xff]
  %v22 = vld [vmem:[%s0 + $0x18] sm:$0xff]
  %v23 = vld [vmem:[%s0 + $0x20] sm:$0xff]
  %v24 = vld [vmem:[%s0 + $0x28] sm:$0xff]
  %v25 = vld [vmem:[%s0 + $0x30] sm:$0xff]
  %v26 = vld [vmem:[%s0 + $0x38] sm:$0xff]
  %v27 = vld [vmem:[%s0 + $0x40] sm:$0xff]
  %v28 = vld [vmem:[%s0 + $0x48] sm:$0xff]
  %v29 = vld [vmem:[%s0 + $0x50] sm:$0xff]
  %v30 = vld [vmem:[%s0 + $0x58] sm:$0xff]
  %v31 = vld [vmem:[%s0 + $0x60] sm:$0xff]
  %v32 = vld [vmem:[%s0 + $0x68] sm:$0xff]
  %v33 = vld [vmem:[%s0 + $0x70] sm:$0xff]
  %v34 = vld [vmem:[%s0 + $0x78] sm:$0xff]
  %v35 = vld [vmem:[%s0 + $0x80] sm:$0xff]
  %v36 = vld [vmem:[%s0 + $0x88] sm:$0xff]
  %v37 = vld [vmem:[%s0 + $0x90] sm:$0xff]
  %v38 = vld [vmem:[%s0 + $0x98] sm:$0xff]
  %v39 = vld [vmem:[%s0 + $0xa0] sm:$0xff]
  %v40 = vld [vmem:[%s0 + $0xa8] sm:$0xff]
  %v41 = vld [vmem:[%s0 + $0xb0] sm:$0xff]
  %v42 = vld [vmem:[%s0 + $0xb8] sm:$0xff]
  %v43 = vld [vmem:[%s0 + $0xc0] sm:$0xff]
  %v44 = vld [vmem:[%s0 + $0xc8] sm:$0xff]
  %v45 = vld [vmem:[%s0 + $0xd0] sm:$0xff]
  %v46 = vld [vmem:[%s0 + $0xd8] sm:$0xff]
  %v47 = vld [vmem:[%s0 + $0xe0] sm:$0xff]
  %v48 = vld [vmem:[%s0 + $0xe8] sm:$0xff]
  %v49 = vld [vmem:[%s0 + $0xf0] sm:$0xff]
  %v50 = vld [vmem:[%s0 + $0xf8] sm:$0xff]
  %v51 = vld [vmem:[%s0 + $0x100] sm:$0xff]
  %v52 = vld [vmem:[%s0 + $0x108] sm:$0xff]
  %v53 = vld [vmem:[%s0 + $0x110] sm:$0xff]
  %v54 = vld [vmem:[%s0 + $0x118] sm:$0xff]
  %v55 = vld [vmem:[%s0 + $0x120] sm:$0x33]
  %v56 = vld [vmem:[%s0 + $0x128] sm:$0x33]
  %v57 = vld [vmem:[%s2] sm:$0xf]
  %59 = vset.pattern.permute.xlu0 0
  %60 = vperm.xlu0 %59, %v57
  %v61 = vpop.permute.xlu0 %60
  %v65 = vunpack.c.l.s4 1983009808
  %v66 = vunpack.c.0.s8 %v65
  %v67 = vlaneseq
  %v68 = vshrl.u32 %v67, 7
  %v69 = vsub.s32 %v66, %v68
  %v70 = vrot.slane %v18, %v69
  %v71 = vcombine.high %v70, %v70
  %v111 = vunpack.c.l.b16 %v19
  %v112 = vunpack.c.h.b16 %v19
  %v113 = vunpack.c.l.b16 %v20
  %v114 = vunpack.c.h.b16 %v20
  %v115 = vunpack.c.l.b16 %v21
  %v116 = vunpack.c.h.b16 %v21
  %v117 = vunpack.c.l.b16 %v22
  %v118 = vunpack.c.h.b16 %v22
  %v119 = vunpack.c.l.b16 %v23
  %v120 = vunpack.c.h.b16 %v23
  %v121 = vunpack.c.l.b16 %v24
  %v122 = vunpack.c.h.b16 %v24
  %v123 = vunpack.c.l.b16 %v25
  %v124 = vunpack.c.h.b16 %v25
  %v125 = vunpack.c.l.b16 %v26
  %v126 = vunpack.c.h.b16 %v26
  %v127 = vunpack.c.l.b16 %v27
  %v128 = vunpack.c.h.b16 %v27
  %v129 = vunpack.c.l.b16 %v28
  %v130 = vunpack.c.h.b16 %v28
  %v131 = vunpack.c.l.b16 %v29
  %v132 = vunpack.c.h.b16 %v29
  %v133 = vunpack.c.l.b16 %v30
  %v134 = vunpack.c.h.b16 %v30
  %v135 = vunpack.c.l.b16 %v31
  %v136 = vunpack.c.h.b16 %v31
  %v137 = vunpack.c.l.b16 %v32
  %v138 = vunpack.c.h.b16 %v32
  %v139 = vunpack.c.l.b16 %v33
  %v140 = vunpack.c.h.b16 %v33
  %v141 = vunpack.c.l.b16 %v34
  %v142 = vunpack.c.h.b16 %v34
  %v143 = vunpack.c.l.b16 %v35
  %v144 = vunpack.c.h.b16 %v35
  %v145 = vunpack.c.l.b16 %v36
  %v146 = vunpack.c.h.b16 %v36
  %v147 = vunpack.c.l.b16 %v37
  %v148 = vunpack.c.h.b16 %v37
  %v149 = vunpack.c.l.b16 %v38
  %v150 = vunpack.c.h.b16 %v38
  %v151 = vunpack.c.l.b16 %v39
  %v152 = vunpack.c.h.b16 %v39
  %v153 = vunpack.c.l.b16 %v40
  %v154 = vunpack.c.h.b16 %v40
  %v155 = vunpack.c.l.b16 %v41
  %v156 = vunpack.c.h.b16 %v41
  %v157 = vunpack.c.l.b16 %v42
  %v158 = vunpack.c.h.b16 %v42
  %v159 = vunpack.c.l.b16 %v43
  %v160 = vunpack.c.h.b16 %v43
  %v161 = vunpack.c.l.b16 %v44
  %v162 = vunpack.c.h.b16 %v44
  %v163 = vunpack.c.l.b16 %v45
  %v164 = vunpack.c.h.b16 %v45
  %v165 = vunpack.c.l.b16 %v46
  %v166 = vunpack.c.h.b16 %v46
  %v167 = vunpack.c.l.b16 %v47
  %v168 = vunpack.c.h.b16 %v47
  %v169 = vunpack.c.l.b16 %v48
  %v170 = vunpack.c.h.b16 %v48
  %v171 = vunpack.c.l.b16 %v49
  %v172 = vunpack.c.h.b16 %v49
  %v173 = vunpack.c.l.b16 %v50
  %v174 = vunpack.c.h.b16 %v50
  %v175 = vunpack.c.l.b16 %v51
  %v176 = vunpack.c.h.b16 %v51
  %v177 = vunpack.c.l.b16 %v52
  %v178 = vunpack.c.h.b16 %v52
  %v179 = vunpack.c.l.b16 %v53
  %v180 = vunpack.c.h.b16 %v53
  %v181 = vunpack.c.l.b16 %v54
  %v182 = vunpack.c.h.b16 %v54
  %v183 = vunpack.c.l.b16 %v55
  %v184 = vunpack.c.h.b16 %v55
  %v185 = vunpack.c.l.b16 %v56
  %v186 = vunpack.c.h.b16 %v56
  %v187 = vpack.c.b16 %v115, %v111
  %v188 = vpack.c.b16 %v116, %v112
  %v189 = vpack.c.b16 %v117, %v113
  %v190 = vpack.c.b16 %v118, %v114
  %v191 = vpack.c.b16 %v123, %v119
  %v192 = vpack.c.b16 %v124, %v120
  %v193 = vpack.c.b16 %v125, %v121
  %v194 = vpack.c.b16 %v126, %v122
  %v195 = vpack.c.b16 %v131, %v127
  %v196 = vpack.c.b16 %v132, %v128
  %v197 = vpack.c.b16 %v133, %v129
  %v198 = vpack.c.b16 %v134, %v130
  %v199 = vpack.c.b16 %v139, %v135
  %v200 = vpack.c.b16 %v140, %v136
  %v201 = vpack.c.b16 %v141, %v137
  %v202 = vpack.c.b16 %v142, %v138
  %v203 = vpack.c.b16 %v147, %v143
  %v204 = vpack.c.b16 %v148, %v144
  %v205 = vpack.c.b16 %v149, %v145
  %v206 = vpack.c.b16 %v150, %v146
  %v207 = vpack.c.b16 %v155, %v151
  %v208 = vpack.c.b16 %v156, %v152
  %v209 = vpack.c.b16 %v157, %v153
  %v210 = vpack.c.b16 %v158, %v154
  %v211 = vpack.c.b16 %v163, %v159
  %v212 = vpack.c.b16 %v164, %v160
  %v213 = vpack.c.b16 %v165, %v161
  %v214 = vpack.c.b16 %v166, %v162
  %v215 = vpack.c.b16 %v171, %v167
  %v216 = vpack.c.b16 %v172, %v168
  %v217 = vpack.c.b16 %v173, %v169
  %v218 = vpack.c.b16 %v174, %v170
  %v219 = vpack.c.b16 %v179, %v175
  %v220 = vpack.c.b16 %v180, %v176
  %v221 = vpack.c.b16 %v181, %v177
  %v222 = vpack.c.b16 %v182, %v178
  %v223 = vpack.c.b16 %v183, %v183
  %v224 = vpack.c.b16 %v184, %v184
  %v225 = vpack.c.b16 %v185, %v185
  %v226 = vpack.c.b16 %v186, %v186
  %vm263 = vcmask 154624
  %v265 = vsel %vm263, %v71, 0
  %vm267 = vcmask 1040384
  %vm268 = vcmask 1041408
  %v269 = vsel %vm267, 4294967295, 65535
  %v270 = vsel %vm268, %v269, 0
  %v272 = vand.u32 %v223, %v270
  %v275 = vand.u32 %v224, %v270
  %v278 = vand.u32 %v225, %v270
  %v281 = vand.u32 %v226, %v270
  %283 = vmatprep.subr.bf16.mxu0 %v188
  %284 = vmatpush1.bf16.msra.mxu0 %v187
  %285 = vmatprep.subr.bf16.mxu0 %v192
  %286 = vmatpush1.bf16.msra.mxu0 %v191
  %287 = vmatprep.subr.bf16.mxu0 %v196
  %288 = vmatpush1.bf16.msra.mxu0 %v195
  %289 = vmatprep.subr.bf16.mxu0 %v200
  %290 = vmatpush1.bf16.msra.mxu0 %v199
  %291 = vmatprep.subr.bf16.mxu0 %v204
  %292 = vmatpush1.bf16.msra.mxu0 %v203
  %293 = vmatprep.subr.bf16.mxu0 %v208
  %294 = vmatpush1.bf16.msra.mxu0 %v207
  %295 = vmatprep.subr.bf16.mxu0 %v212
  %296 = vmatpush1.bf16.msra.mxu0 %v211
  %297 = vmatprep.subr.bf16.mxu0 %v216
  %298 = vmatpush1.bf16.msra.mxu0 %v215
  %299 = vmatprep.subr.bf16.mxu0 %v220
  %300 = vmatpush1.bf16.msra.mxu0 %v219
  %301 = vmatprep.subr.bf16.mxu0 %v275
  %302 = vmatpush1.bf16.msra.mxu0 %v272
  %303 = vmatprep.subr.bf16.mxu0 0
  %304 = vmatpush1.bf16.msra.mxu0 0
  %305 = vmatprep.subr.bf16.mxu0 0
  %306 = vmatpush1.bf16.msra.mxu0 0
  %307 = vmatprep.subr.bf16.mxu0 0
  %308 = vmatpush1.bf16.msra.mxu0 0
  %309 = vmatprep.subr.bf16.mxu0 0
  %310 = vmatpush1.bf16.msra.mxu0 0
  %311 = vmatprep.subr.bf16.mxu0 0
  %312 = vmatpush1.bf16.msra.mxu0 0
  %313 = vmatprep.subr.bf16.mxu0 0
  %314 = vmatpush1.bf16.msra.mxu0 0
  %315 = vmatprep.mubr.bf16.mxu0 %v265
  %316 = vmatmul.mubr.bf16.gmra.mrb[0].mxu0 %v70
  %v317 = vpop.f32.mrb[0].mxu0
  %v318 = vadd.f32 %v61, %v317
  %v319 = vpop.f32.mrb[0].mxu0
  %v320 = vadd.f32 %v61, %v319
  %v321 = vpop.f32.mrb[0].mxu0
  %v322 = vpop.f32.mrb[0].mxu0
  %323 = vdwg.mxu0
  %324 = vmatprep.subr.bf16.mxu0 %v190
  %325 = vmatpush1.bf16.msra.mxu0 %v189
  %326 = vmatprep.subr.bf16.mxu0 %v194
  %327 = vmatpush1.bf16.msra.mxu0 %v193
  %328 = vmatprep.subr.bf16.mxu0 %v198
  %329 = vmatpush1.bf16.msra.mxu0 %v197
  %330 = vmatprep.subr.bf16.mxu0 %v202
  %331 = vmatpush1.bf16.msra.mxu0 %v201
  %332 = vmatprep.subr.bf16.mxu0 %v206
  %333 = vmatpush1.bf16.msra.mxu0 %v205
  %334 = vmatprep.subr.bf16.mxu0 %v210
  %335 = vmatpush1.bf16.msra.mxu0 %v209
  %336 = vmatprep.subr.bf16.mxu0 %v214
  %337 = vmatpush1.bf16.msra.mxu0 %v213
  %338 = vmatprep.subr.bf16.mxu0 %v218
  %339 = vmatpush1.bf16.msra.mxu0 %v217
  %340 = vmatprep.subr.bf16.mxu0 %v222
  %341 = vmatpush1.bf16.msra.mxu0 %v221
  %342 = vmatprep.subr.bf16.mxu0 %v281
  %343 = vmatpush1.bf16.msra.mxu0 %v278
  %344 = vmatprep.subr.bf16.mxu0 0
  %345 = vmatpush1.bf16.msra.mxu0 0
  %346 = vmatprep.subr.bf16.mxu0 0
  %347 = vmatpush1.bf16.msra.mxu0 0
  %348 = vmatprep.subr.bf16.mxu0 0
  %349 = vmatpush1.bf16.msra.mxu0 0
  %350 = vmatprep.subr.bf16.mxu0 0
  %351 = vmatpush1.bf16.msra.mxu0 0
  %352 = vmatprep.subr.bf16.mxu0 0
  %353 = vmatpush1.bf16.msra.mxu0 0
  %354 = vmatprep.subr.bf16.mxu0 0
  %355 = vmatpush1.bf16.msra.mxu0 0
  %356 = vmatprep.mubr.bf16.mxu0 %v265
  %357 = vmatmul.mubr.bf16.gmra.mrb[0].mxu0 %v70
  %v358 = vpop.f32.mrb[0].mxu0
  %v359 = vadd.f32 %v61, %v358
  %v360 = vpop.f32.mrb[0].mxu0
  %v361 = vadd.f32 %v61, %v360
  %v362 = vpop.f32.mrb[0].mxu0
  %v363 = vpop.f32.mrb[0].mxu0
  %364 = vdwg.mxu0
  %vm365 = vcmask 1043456
  %v366 = vsel %vm365, %v318, 0.0
  %v367 = vsel %vm365, %v320, 0.0
  %v368 = vadd.f32 %v366, %v367
  %v369 = vsel %vm365, %v359, 0.0
  %v370 = vadd.f32 %v368, %v369
  %v371 = vsel %vm365, %v361, 0.0
  %v372 = vadd.f32 %v370, %v371
  %373 = vadd.xlane.f32.xlu0 %v372
  %v374 = vpop.xlane.xlu0 %373
  %v375 = vmul.f32 %v318, %v318
  %v376 = vmul.f32 %v320, %v320
  %v377 = vmul.f32 %v359, %v359
  %v378 = vmul.f32 %v361, %v361
  %v379 = vsel %vm365, %v375, 0.0
  %v380 = vsel %vm365, %v376, 0.0
  %v381 = vadd.f32 %v379, %v380
  %v382 = vsel %vm365, %v377, 0.0
  %v383 = vadd.f32 %v381, %v382
  %v384 = vsel %vm365, %v378, 0.0
  %v385 = vadd.f32 %v383, %v384
  %386 = vadd.xlane.f32.xlu0 %v385
  %v387 = vpop.xlane.xlu0 %386
  %388 = vst [vmem:[%s4] sm:$0xf] %v374
  %389 = vst [vmem:[%s5] sm:$0xf] %v387
  %v390 = vpack.c.bf16 %v318, %v318
  %v391 = vpack.c.bf16 %v320, %v320
  %v392 = vpack.c.bf16 %v359, %v359
  %v393 = vpack.c.bf16 %v361, %v361
  %v398 = vcombine.low %v390, %v391
  %v399 = vcombine.low %v392, %v393
  %v401 = vunpack.c.l.s4 1983009808
  %v402 = vunpack.c.0.s8 %v401
  %v403 = vlaneseq
  %v404 = vshrl.u32 %v403, 7
  %v405 = vsub.s32 %v402, %v404
  %v406 = vrot.slane %v398, %v405
  %v408 = vunpack.c.l.s4 1983009808
  %v409 = vunpack.c.0.s8 %v408
  %v410 = vlaneseq
  %v411 = vshrl.u32 %v410, 7
  %v412 = vsub.s32 %v409, %v411
  %v413 = vrot.slane %v399, %v412
  %v414 = vcombine.low %v406, %v413
  %416 = vst [vmem:[%s3] sm:$0xff] %v414
  // Predicated region
  $region14: #{unet_forward.15} parent=0 // pred_check
    _
  $region15: #{unet_forward.15} parent=0 // pred_check_branch
    %418 = sbr.rel (0) target = $region17
  $region16: #{unet_forward.15} parent=0 // pred_region
    _
  $region17: #{unet_forward.15} parent=0 // pred_fallthru
    _
  // Predicated region
  $region18: #{unet_forward.15} parent=0 // pred_check
    _
  $region19: #{unet_forward.15} parent=0 // pred_check_branch
    %420 = sbr.rel (0) target = $region21
  $region20: #{unet_forward.15} parent=0 // pred_region
    _
  $region21: #{unet_forward.15} parent=0 // pred_fallthru
    _
  // Predicated region
  $region22: #{unet_forward.15} parent=0 // pred_check
    _
  $region23: #{unet_forward.15} parent=0 // pred_check_branch
    %422 = sbr.rel (0) target = $region25
  $region24: #{unet_forward.15} parent=0 // pred_region
    _
  $region25: #{unet_forward.15} parent=0 // pred_fallthru
    _
  // Predicated region
  $region26: #{unet_forward.15} parent=0 // pred_check
    _
  $region27: #{unet_forward.15} parent=0 // pred_check_branch
    %424 = sbr.rel (0) target = $region29
  $region28: #{unet_forward.15} parent=0 // pred_region
    _
  $region29: #{unet_forward.15} parent=0 // pred_fallthru
    _
  // Predicated region
  $region30: #{unet_forward.15} parent=0 // pred_check
    _
  $region31: #{unet_forward.15} parent=0 // pred_check_branch
    %426 = sbr.rel (0) target = $region33
  $region32: #{unet_forward.15} parent=0 // pred_region
    _
  $region33: #{unet_forward.15} parent=0 // pred_fallthru
    _
  // Predicated region
  $region34: #{unet_forward.15} parent=0 // pred_check
    _
  $region35: #{unet_forward.15} parent=0 // pred_check_branch
    %428 = sbr.rel (0) target = $region37
  $region36: #{unet_forward.15} parent=0 // pred_region
    _
  $region37: #{unet_forward.15} parent=0 // pred_fallthru
    _

// kernel: unet_forward.18
$region0: #{unet_forward.18}
  #allocation0 [shape = 'u32[]', space=smem, size = 0x4, offset = 0x4, fixed_abs, tag = 'smem constant byte address 0x4 - core index']
  #allocation1 [shape = 'u32[144,128]{1,0:T(1,128)}', space=vmem, size = 0x12000, scoped, tag = 'internal scratch']
  %s0 = inlined_call_operand.vmem [shape: bf16[8,128], index: 0, kind: input, shape index: {}]
  %s1 = inlined_call_operand.vmem [shape: f32[8,1], index: 1, kind: input, shape index: {}]
  %s2 = inlined_call_operand.vmem [shape: f32[8,1], index: 2, kind: input, shape index: {}]
  %s3 = inlined_call_operand.vmem [shape: bf16[8,128], index: 3, kind: output, shape index: {}]
  %s4 = sld [smem:[#allocation0]]
  $region22: #{unet_forward.18} parent=0
    _
  %s6 = ssub.s32 1, %s4
  %s7 = scalar_select 0, %s6, %s4
  // Predicated region
  $region2: #{unet_forward.18} parent=0 // pred_check
    _
  $region3: #{unet_forward.18} parent=0 // pred_check_branch
    %9 = sbr.rel (0) target = $region5
  $region4: #{unet_forward.18} parent=0 // pred_region
    _
  $region5: #{unet_forward.18} parent=0 // pred_fallthru
    _
  // Predicated region
  $region6: #{unet_forward.18} parent=0 // pred_check
    _
  $region7: #{unet_forward.18} parent=0 // pred_check_branch
    %11 = sbr.rel (0) target = $region9
  $region8: #{unet_forward.18} parent=0 // pred_region
    _
  $region9: #{unet_forward.18} parent=0 // pred_fallthru
    _
  // Predicated region
  $region10: #{unet_forward.18} parent=0 // pred_check
    _
  $region11: #{unet_forward.18} parent=0 // pred_check_branch
    %13 = sbr.rel (0) target = $region13
  $region12: #{unet_forward.18} parent=0 // pred_region
    _
  $region13: #{unet_forward.18} parent=0 // pred_fallthru
    _
  %v14 = vld [vmem:[%s0] sm:$0xf]
  %v15 = vunpack.c.l.bf16 %v14
  %v16 = vld [vmem:[%s1] sm:$0xff]
  %18 = vset.pattern.permute.xlu0 0
  %19 = vperm.xlu0 %18, %v16
  %v20 = vpop.permute.xlu0 %19
  %v22 = vmul.f32 %v15, %v20
  %v23 = vld [vmem:[%s2] sm:$0xff]
  %25 = vset.pattern.permute.xlu0 0
  %26 = vperm.xlu0 %25, %v23
  %v27 = vpop.permute.xlu0 %26
  %v29 = vadd.f32 %v22, %v27
  %v30 = vmax.f32 %v29, 0.0
  %v31 = vpack.c.bf16 %v30, %v30
  %32 = vst [vmem:[%s3] sm:$0xf] %v31
  // Predicated region
  $region14: #{unet_forward.18} parent=0 // pred_check
    _
  $region15: #{unet_forward.18} parent=0 // pred_check_branch
    %34 = sbr.rel (0) target = $region17
  $region16: #{unet_forward.18} parent=0 // pred_region
    _
  $region17: #{unet_forward.18} parent=0 // pred_fallthru
    _
  // Predicated region
  $region18: #{unet_forward.18} parent=0 // pred_check
    _
  $region19: #{unet_forward.18} parent=0 // pred_check_branch
    %36 = sbr.rel (0) target = $region21
  $region20: #{unet_forward.18} parent=0 // pred_region
    _
  $region21: #{unet_forward.18} parent=0 // pred_fallthru
    _

// kernel: unet_forward.17
$region0: #{unet_forward.17}
  #allocation0 [shape = 'u32[]', space=smem, size = 0x4, offset = 0x4, fixed_abs, tag = 'smem constant byte address 0x4 - core index']
  #allocation1 [shape = 'u32[144,128]{1,0:T(1,128)}', space=vmem, size = 0x12000, scoped, tag = 'internal scratch']
  %s0 = inlined_call_operand.vmem [shape: bf16[64,128], index: 0, kind: input, shape index: {}]
  %s1 = inlined_call_operand.vmem [shape: bf16[8,64], index: 1, kind: input, shape index: {}]
  %s2 = inlined_call_operand.vmem [shape: f32[8,1], index: 2, kind: input, shape index: {}]
  %s3 = inlined_call_operand.vmem [shape: bf16[8,128], index: 3, kind: output, shape index: {0}]
  %s4 = inlined_call_operand.vmem [shape: f32[8,128], index: 4, kind: output, shape index: {1}]
  %s5 = inlined_call_operand.vmem [shape: f32[8,128], index: 5, kind: output, shape index: {2}]
  %6 = xla_tuple %s3, %s4, %s5
  %s7 = sld [smem:[#allocation0]]
  $region38: #{unet_forward.17} parent=0
    _
  %s9 = ssub.s32 1, %s7
  %s10 = scalar_select 0, %s9, %s7
  // Predicated region
  $region2: #{unet_forward.17} parent=0 // pred_check
    _
  $region3: #{unet_forward.17} parent=0 // pred_check_branch
    %12 = sbr.rel (0) target = $region5
  $region4: #{unet_forward.17} parent=0 // pred_region
    _
  $region5: #{unet_forward.17} parent=0 // pred_fallthru
    _
  // Predicated region
  $region6: #{unet_forward.17} parent=0 // pred_check
    _
  $region7: #{unet_forward.17} parent=0 // pred_check_branch
    %14 = sbr.rel (0) target = $region9
  $region8: #{unet_forward.17} parent=0 // pred_region
    _
  $region9: #{unet_forward.17} parent=0 // pred_fallthru
    _
  // Predicated region
  $region10: #{unet_forward.17} parent=0 // pred_check
    _
  $region11: #{unet_forward.17} parent=0 // pred_check_branch
    %16 = sbr.rel (0) target = $region13
  $region12: #{unet_forward.17} parent=0 // pred_region
    _
  $region13: #{unet_forward.17} parent=0 // pred_fallthru
    _
  %v18 = vld [vmem:[%s1] sm:$0xf]
  %v19 = vld [vmem:[%s0] sm:$0xf]
  %v20 = vld [vmem:[%s0 + $0x4] sm:$0xf]
  %v21 = vld [vmem:[%s0 + $0x8] sm:$0xf]
  %v22 = vld [vmem:[%s0 + $0xc] sm:$0xf]
  %v23 = vld [vmem:[%s0 + $0x10] sm:$0xf]
  %v24 = vld [vmem:[%s0 + $0x14] sm:$0xf]
  %v25 = vld [vmem:[%s0 + $0x18] sm:$0xf]
  %v26 = vld [vmem:[%s0 + $0x1c] sm:$0xf]
  %v27 = vld [vmem:[%s2] sm:$0xff]
  %29 = vset.pattern.permute.xlu0 0
  %30 = vperm.xlu0 %29, %v27
  %v31 = vpop.permute.xlu0 %30
  %v41 = vunpack.c.l.b16 %v19
  %v42 = vunpack.c.l.b16 %v20
  %v43 = vunpack.c.l.b16 %v21
  %v44 = vunpack.c.l.b16 %v22
  %v45 = vunpack.c.l.b16 %v23
  %v46 = vunpack.c.l.b16 %v24
  %v47 = vunpack.c.l.b16 %v25
  %v48 = vunpack.c.l.b16 %v26
  %v49 = vpack.c.b16 %v42, %v41
  %v50 = vpack.c.b16 %v44, %v43
  %v51 = vpack.c.b16 %v46, %v45
  %v52 = vpack.c.b16 %v48, %v47
  %vm57 = vcmask 523264
  %v59 = vsel %vm57, %v18, 0
  %61 = vmatprep.subr.bf16.mxu0 0
  %62 = vmatpush1.bf16.msra.mxu0 %v49
  %63 = vmatprep.subr.bf16.mxu0 0
  %64 = vmatpush1.bf16.msra.mxu0 %v50
  %65 = vmatprep.subr.bf16.mxu0 0
  %66 = vmatpush1.bf16.msra.mxu0 %v51
  %67 = vmatprep.subr.bf16.mxu0 0
  %68 = vmatpush1.bf16.msra.mxu0 %v52
  %69 = vmatprep.subr.bf16.mxu0 0
  %70 = vmatpush1.bf16.msra.mxu0 0
  %71 = vmatprep.subr.bf16.mxu0 0
  %72 = vmatpush1.bf16.msra.mxu0 0
  %73 = vmatprep.subr.bf16.mxu0 0
  %74 = vmatpush1.bf16.msra.mxu0 0
  %75 = vmatprep.subr.bf16.mxu0 0
  %76 = vmatpush1.bf16.msra.mxu0 0
  %77 = vmatprep.subr.bf16.mxu0 0
  %78 = vmatpush1.bf16.msra.mxu0 0
  %79 = vmatprep.subr.bf16.mxu0 0
  %80 = vmatpush1.bf16.msra.mxu0 0
  %81 = vmatprep.subr.bf16.mxu0 0
  %82 = vmatpush1.bf16.msra.mxu0 0
  %83 = vmatprep.subr.bf16.mxu0 0
  %84 = vmatpush1.bf16.msra.mxu0 0
  %85 = vmatprep.subr.bf16.mxu0 0
  %86 = vmatpush1.bf16.msra.mxu0 0
  %87 = vmatprep.subr.bf16.mxu0 0
  %88 = vmatpush1.bf16.msra.mxu0 0
  %89 = vmatprep.subr.bf16.mxu0 0
  %90 = vmatpush1.bf16.msra.mxu0 0
  %91 = vmatprep.subr.bf16.mxu0 0
  %92 = vmatpush1.bf16.msra.mxu0 0
  %93 = vmatprep.mubr.bf16.mxu0 0
  %94 = vmatmul.mubr.bf16.gmra.mrb[0].mxu0 %v59
  %v95 = vpop.f32.mrb[0].mxu0
  %v96 = vadd.f32 %v31, %v95
  %v97 = vpop.f32.mrb[0].mxu0
  %v98 = vpop.f32.mrb[0].mxu0
  %v99 = vpop.f32.mrb[0].mxu0
  %100 = vdwg.mxu0
  %101 = vadd.xlane.f32.xlu0 %v96
  %v102 = vpop.xlane.xlu0 %101
  %v103 = vmul.f32 %v96, %v96
  %104 = vadd.xlane.f32.xlu0 %v103
  %v105 = vpop.xlane.xlu0 %104
  %106 = vst [vmem:[%s4] sm:$0xff] %v102
  %107 = vst [vmem:[%s5] sm:$0xff] %v105
  %v108 = vpack.c.bf16 %v96, %v96
  %109 = vst [vmem:[%s3] sm:$0xf] %v108
  // Predicated region
  $region14: #{unet_forward.17} parent=0 // pred_check
    _
  $region15: #{unet_forward.17} parent=0 // pred_check_branch
    %111 = sbr.rel (0) target = $region17
  $region16: #{unet_forward.17} parent=0 // pred_region
    _
  $region17: #{unet_forward.17} parent=0 // pred_fallthru
    _
  // Predicated region
  $region18: #{unet_forward.17} parent=0 // pred_check
    _
  $region19: #{unet_forward.17} parent=0 // pred_check_branch
    %113 = sbr.rel (0) target = $region21
  $region20: #{unet_forward.17} parent=0 // pred_region
    _
  $region21: #{unet_forward.17} parent=0 // pred_fallthru
    _
  // Predicated region
  $region22: #{unet_forward.17} parent=0 // pred_check
    _
  $region23: #{unet_forward.17} parent=0 // pred_check_branch
    %115 = sbr.rel (0) target = $region25
  $region24: #{unet_forward.17} parent=0 // pred_region
    _
  $region25: #{unet_forward.17} parent=0 // pred_fallthru
    _
  // Predicated region
  $region26: #{unet_forward.17} parent=0 // pred_check
    _
  $region27: #{unet_forward.17} parent=0 // pred_check_branch
    %117 = sbr.rel (0) target = $region29
  $region28: #{unet_forward.17} parent=0 // pred_region
    _
  $region29: #{unet_forward.17} parent=0 // pred_fallthru
    _
  // Predicated region
  $region30: #{unet_forward.17} parent=0 // pred_check
    _
  $region31: #{unet_forward.17} parent=0 // pred_check_branch
    %119 = sbr.rel (0) target = $region33
  $region32: #{unet_forward.17} parent=0 // pred_region
    _
  $region33: #{unet_forward.17} parent=0 // pred_fallthru
    _
  // Predicated region
  $region34: #{unet_forward.17} parent=0 // pred_check
    _
  $region35: #{unet_forward.17} parent=0 // pred_check_branch
    %121 = sbr.rel (0) target = $region37
  $region36: #{unet_forward.17} parent=0 // pred_region
    _
  $region37: #{unet_forward.17} parent=0 // pred_fallthru
    _

// kernel: unet_forward.20
$region0: #{unet_forward.20}
  #allocation0 [shape = 'u32[]', space=smem, size = 0x4, offset = 0x4, fixed_abs, tag = 'smem constant byte address 0x4 - core index']
  #allocation1 [shape = 'u32[144,128]{1,0:T(1,128)}', space=vmem, size = 0x12000, scoped, tag = 'internal scratch']
  %s0 = inlined_call_operand.vmem [shape: bf16[16,32], index: 0, kind: input, shape index: {}]
  %s1 = inlined_call_operand.vmem [shape: f32[16,1], index: 1, kind: input, shape index: {}]
  %s2 = inlined_call_operand.vmem [shape: f32[16,1], index: 2, kind: input, shape index: {}]
  %s3 = inlined_call_operand.vmem [shape: bf16[16,32], index: 3, kind: output, shape index: {}]
  %s4 = sld [smem:[#allocation0]]
  $region22: #{unet_forward.20} parent=0
    _
  %s6 = ssub.s32 1, %s4
  %s7 = scalar_select 0, %s6, %s4
  // Predicated region
  $region2: #{unet_forward.20} parent=0 // pred_check
    _
  $region3: #{unet_forward.20} parent=0 // pred_check_branch
    %9 = sbr.rel (0) target = $region5
  $region4: #{unet_forward.20} parent=0 // pred_region
    _
  $region5: #{unet_forward.20} parent=0 // pred_fallthru
    _
  // Predicated region
  $region6: #{unet_forward.20} parent=0 // pred_check
    _
  $region7: #{unet_forward.20} parent=0 // pred_check_branch
    %11 = sbr.rel (0) target = $region9
  $region8: #{unet_forward.20} parent=0 // pred_region
    _
  $region9: #{unet_forward.20} parent=0 // pred_fallthru
    _
  // Predicated region
  $region10: #{unet_forward.20} parent=0 // pred_check
    _
  $region11: #{unet_forward.20} parent=0 // pred_check_branch
    %13 = sbr.rel (0) target = $region13
  $region12: #{unet_forward.20} parent=0 // pred_region
    _
  $region13: #{unet_forward.20} parent=0 // pred_fallthru
    _
  %v14 = vld [vmem:[%s0] sm:$0xf]
  %v15 = vld [vmem:[%s0 + $0x4] sm:$0xf]
  %v16 = vunpack.c.l.bf16 %v14
  %v17 = vunpack.c.l.bf16 %v15
  %v18 = vld [vmem:[%s1] sm:$0xff]
  %v19 = vld [vmem:[%s1 + $0x8] sm:$0xff]
  %21 = vset.pattern.permute.xlu0 0
  %22 = vperm.xlu0 %21, %v18
  %v23 = vpop.permute.xlu0 %22
  %26 = vset.pattern.permute.xlu0 0
  %27 = vperm.xlu0 %26, %v19
  %v28 = vpop.permute.xlu0 %27
  %v30 = vmul.f32 %v16, %v23
  %v31 = vmul.f32 %v17, %v28
  %v32 = vld [vmem:[%s2] sm:$0xff]
  %v33 = vld [vmem:[%s2 + $0x8] sm:$0xff]
  %35 = vset.pattern.permute.xlu0 0
  %36 = vperm.xlu0 %35, %v32
  %v37 = vpop.permute.xlu0 %36
  %40 = vset.pattern.permute.xlu0 0
  %41 = vperm.xlu0 %40, %v33
  %v42 = vpop.permute.xlu0 %41
  %v44 = vadd.f32 %v30, %v37
  %v45 = vadd.f32 %v31, %v42
  %v46 = vmax.f32 %v44, 0.0
  %v47 = vmax.f32 %v45, 0.0
  %v48 = vpack.c.bf16 %v47, %v46
  %v50 = vunpack.c.l.b16 %v48
  %v51 = vunpack.c.h.b16 %v48
  %v52 = vpack.c.b16 %v50, %v50
  %v53 = vpack.c.b16 %v51, %v51
  %vm56 = vcmask 257024
  %57 = vst.msk [vmem:[%s3] sm:$0xf] %vm56, %v52
  %58 = vst.msk [vmem:[%s3 + $0x4] sm:$0xf] %vm56, %v53
  // Predicated region
  $region14: #{unet_forward.20} parent=0 // pred_check
    _
  $region15: #{unet_forward.20} parent=0 // pred_check_branch
    %60 = sbr.rel (0) target = $region17
  $region16: #{unet_forward.20} parent=0 // pred_region
    _
  $region17: #{unet_forward.20} parent=0 // pred_fallthru
    _
  // Predicated region
  $region18: #{unet_forward.20} parent=0 // pred_check
    _
  $region19: #{unet_forward.20} parent=0 // pred_check_branch
    %62 = sbr.rel (0) target = $region21
  $region20: #{unet_forward.20} parent=0 // pred_region
    _
  $region21: #{unet_forward.20} parent=0 // pred_fallthru
    _

// kernel: unet_forward.19
$region0: #{unet_forward.19}
  #allocation0 [shape = 'u32[]', space=smem, size = 0x4, offset = 0x4, fixed_abs, tag = 'smem constant byte address 0x4 - core index']
  #allocation1 [shape = 'u32[144,128]{1,0:T(1,128)}', space=vmem, size = 0x12000, scoped, tag = 'internal scratch']
  %s0 = inlined_call_operand.vmem [shape: bf16[128,32], index: 0, kind: input, shape index: {}]
  %s1 = inlined_call_operand.vmem [shape: bf16[16,128], index: 1, kind: input, shape index: {}]
  %s2 = inlined_call_operand.vmem [shape: f32[16,1], index: 2, kind: input, shape index: {}]
  %s3 = inlined_call_operand.vmem [shape: bf16[16,32], index: 3, kind: output, shape index: {0}]
  %s4 = inlined_call_operand.vmem [shape: f32[16,128], index: 4, kind: output, shape index: {1}]
  %s5 = inlined_call_operand.vmem [shape: f32[16,128], index: 5, kind: output, shape index: {2}]
  %6 = xla_tuple %s3, %s4, %s5
  %s7 = sld [smem:[#allocation0]]
  $region38: #{unet_forward.19} parent=0
    _
  %s9 = ssub.s32 1, %s7
  %s10 = scalar_select 0, %s9, %s7
  // Predicated region
  $region2: #{unet_forward.19} parent=0 // pred_check
    _
  $region3: #{unet_forward.19} parent=0 // pred_check_branch
    %12 = sbr.rel (0) target = $region5
  $region4: #{unet_forward.19} parent=0 // pred_region
    _
  $region5: #{unet_forward.19} parent=0 // pred_fallthru
    _
  // Predicated region
  $region6: #{unet_forward.19} parent=0 // pred_check
    _
  $region7: #{unet_forward.19} parent=0 // pred_check_branch
    %14 = sbr.rel (0) target = $region9
  $region8: #{unet_forward.19} parent=0 // pred_region
    _
  $region9: #{unet_forward.19} parent=0 // pred_fallthru
    _
  // Predicated region
  $region10: #{unet_forward.19} parent=0 // pred_check
    _
  $region11: #{unet_forward.19} parent=0 // pred_check_branch
    %16 = sbr.rel (0) target = $region13
  $region12: #{unet_forward.19} parent=0 // pred_region
    _
  $region13: #{unet_forward.19} parent=0 // pred_fallthru
    _
  %v18 = vld [vmem:[%s1] sm:$0xf]
  %v19 = vld [vmem:[%s1 + $0x4] sm:$0xf]
  %v20 = vld [vmem:[%s0] sm:$0xf]
  %v21 = vld [vmem:[%s0 + $0x4] sm:$0xf]
  %v22 = vld [vmem:[%s0 + $0x8] sm:$0xf]
  %v23 = vld [vmem:[%s0 + $0xc] sm:$0xf]
  %v24 = vld [vmem:[%s0 + $0x10] sm:$0xf]
  %v25 = vld [vmem:[%s0 + $0x14] sm:$0xf]
  %v26 = vld [vmem:[%s0 + $0x18] sm:$0xf]
  %v27 = vld [vmem:[%s0 + $0x1c] sm:$0xf]
  %v28 = vld [vmem:[%s0 + $0x20] sm:$0xf]
  %v29 = vld [vmem:[%s0 + $0x24] sm:$0xf]
  %v30 = vld [vmem:[%s0 + $0x28] sm:$0xf]
  %v31 = vld [vmem:[%s0 + $0x2c] sm:$0xf]
  %v32 = vld [vmem:[%s0 + $0x30] sm:$0xf]
  %v33 = vld [vmem:[%s0 + $0x34] sm:$0xf]
  %v34 = vld [vmem:[%s0 + $0x38] sm:$0xf]
  %v35 = vld [vmem:[%s0 + $0x3c] sm:$0xf]
  %v36 = vld [vmem:[%s2] sm:$0xff]
  %v37 = vld [vmem:[%s2 + $0x8] sm:$0xff]
  %39 = vset.pattern.permute.xlu0 0
  %40 = vperm.xlu0 %39, %v36
  %v41 = vpop.permute.xlu0 %40
  %44 = vset.pattern.permute.xlu0 0
  %45 = vperm.xlu0 %44, %v37
  %v46 = vpop.permute.xlu0 %45
  %v50 = vunpack.c.l.b16 %v18
  %v51 = vunpack.c.l.b16 %v19
  %v52 = vpack.c.b16 %v51, %v50
  %v70 = vunpack.c.l.b16 %v20
  %v71 = vunpack.c.l.b16 %v21
  %v72 = vunpack.c.l.b16 %v22
  %v73 = vunpack.c.l.b16 %v23
  %v74 = vunpack.c.l.b16 %v24
  %v75 = vunpack.c.l.b16 %v25
  %v76 = vunpack.c.l.b16 %v26
  %v77 = vunpack.c.l.b16 %v27
  %v78 = vunpack.c.l.b16 %v28
  %v79 = vunpack.c.l.b16 %v29
  %v80 = vunpack.c.l.b16 %v30
  %v81 = vunpack.c.l.b16 %v31
  %v82 = vunpack.c.l.b16 %v32
  %v83 = vunpack.c.l.b16 %v33
  %v84 = vunpack.c.l.b16 %v34
  %v85 = vunpack.c.l.b16 %v35
  %v86 = vpack.c.b16 %v71, %v70
  %v87 = vpack.c.b16 %v73, %v72
  %v88 = vpack.c.b16 %v75, %v74
  %v89 = vpack.c.b16 %v77, %v76
  %v90 = vpack.c.b16 %v79, %v78
  %v91 = vpack.c.b16 %v81, %v80
  %v92 = vpack.c.b16 %v83, %v82
  %v93 = vpack.c.b16 %v85, %v84
  %102 = vmatprep.subr.bf16.mxu0 0
  %103 = vmatpush1.bf16.msra.mxu0 %v86
  %104 = vmatprep.subr.bf16.mxu0 0
  %105 = vmatpush1.bf16.msra.mxu0 %v87
  %106 = vmatprep.subr.bf16.mxu0 0
  %107 = vmatpush1.bf16.msra.mxu0 %v88
  %108 = vmatprep.subr.bf16.mxu0 0
  %109 = vmatpush1.bf16.msra.mxu0 %v89
  %110 = vmatprep.subr.bf16.mxu0 0
  %111 = vmatpush1.bf16.msra.mxu0 %v90
  %112 = vmatprep.subr.bf16.mxu0 0
  %113 = vmatpush1.bf16.msra.mxu0 %v91
  %114 = vmatprep.subr.bf16.mxu0 0
  %115 = vmatpush1.bf16.msra.mxu0 %v92
  %116 = vmatprep.subr.bf16.mxu0 0
  %117 = vmatpush1.bf16.msra.mxu0 %v93
  %118 = vmatprep.subr.bf16.mxu0 0
  %119 = vmatpush1.bf16.msra.mxu0 0
  %120 = vmatprep.subr.bf16.mxu0 0
  %121 = vmatpush1.bf16.msra.mxu0 0
  %122 = vmatprep.subr.bf16.mxu0 0
  %123 = vmatpush1.bf16.msra.mxu0 0
  %124 = vmatprep.subr.bf16.mxu0 0
  %125 = vmatpush1.bf16.msra.mxu0 0
  %126 = vmatprep.subr.bf16.mxu0 0
  %127 = vmatpush1.bf16.msra.mxu0 0
  %128 = vmatprep.subr.bf16.mxu0 0
  %129 = vmatpush1.bf16.msra.mxu0 0
  %130 = vmatprep.subr.bf16.mxu0 0
  %131 = vmatpush1.bf16.msra.mxu0 0
  %132 = vmatprep.subr.bf16.mxu0 0
  %133 = vmatpush1.bf16.msra.mxu0 0
  %134 = vmatprep.mubr.bf16.mxu0 0
  %135 = vmatmul.mubr.bf16.gmra.mrb[0].mxu0 %v52
  %v136 = vpop.f32.mrb[0].mxu0
  %v137 = vadd.f32 %v41, %v136
  %v138 = vpop.f32.mrb[0].mxu0
  %v139 = vpop.f32.mrb[0].mxu0
  %v140 = vadd.f32 %v46, %v139
  %v141 = vpop.f32.mrb[0].mxu0
  %142 = vdwg.mxu0
  %vm143 = vcmask 261120
  %v144 = vsel %vm143, %v137, 0.0
  %145 = vadd.xlane.f32.xlu0 %v144
  %v146 = vpop.xlane.xlu0 %145
  %v147 = vsel %vm143, %v140, 0.0
  %148 = vadd.xlane.f32.xlu0 %v147
  %v149 = vpop.xlane.xlu0 %148
  %v150 = vmul.f32 %v137, %v137
  %v151 = vmul.f32 %v140, %v140
  %v152 = vsel %vm143, %v150, 0.0
  %153 = vadd.xlane.f32.xlu0 %v152
  %v154 = vpop.xlane.xlu0 %153
  %v155 = vsel %vm143, %v151, 0.0
  %156 = vadd.xlane.f32.xlu0 %v155
  %v157 = vpop.xlane.xlu0 %156
  %158 = vst [vmem:[%s4] sm:$0xff] %v146
  %159 = vst [vmem:[%s4 + $0x8] sm:$0xff] %v149
  %160 = vst [vmem:[%s5] sm:$0xff] %v154
  %161 = vst [vmem:[%s5 + $0x8] sm:$0xff] %v157
  %v162 = vpack.c.bf16 %v140, %v137
  %v164 = vunpack.c.l.b16 %v162
  %v165 = vunpack.c.h.b16 %v162
  %v166 = vpack.c.b16 %v164, %v164
  %v167 = vpack.c.b16 %v165, %v165
  %vm170 = vcmask 257024
  %171 = vst.msk [vmem:[%s3] sm:$0xf] %vm170, %v166
  %172 = vst.msk [vmem:[%s3 + $0x4] sm:$0xf] %vm170, %v167
  // Predicated region
  $region14: #{unet_forward.19} parent=0 // pred_check
    _
  $region15: #{unet_forward.19} parent=0 // pred_check_branch
    %174 = sbr.rel (0) target = $region17
  $region16: #{unet_forward.19} parent=0 // pred_region
    _
  $region17: #{unet_forward.19} parent=0 // pred_fallthru
    _
  // Predicated region
  $region18: #{unet_forward.19} parent=0 // pred_check
    _
  $region19: #{unet_forward.19} parent=0 // pred_check_branch
    %176 = sbr.rel (0) target = $region21
  $region20: #{unet_forward.19} parent=0 // pred_region
    _
  $region21: #{unet_forward.19} parent=0 // pred_fallthru
    _
  // Predicated region
  $region22: #{unet_forward.19} parent=0 // pred_check
    _
  $region23: #{unet_forward.19} parent=0 // pred_check_branch
    %178 = sbr.rel (0) target = $region25
  $region24: #{unet_forward.19} parent=0 // pred_region
    _
  $region25: #{unet_forward.19} parent=0 // pred_fallthru
    _
  // Predicated region
  $region26: #{unet_forward.19} parent=0 // pred_check
    _
  $region27: #{unet_forward.19} parent=0 // pred_check_branch
    %180 = sbr.rel (0) target = $region29
  $region28: #{unet_forward.19} parent=0 // pred_region
    _
  $region29: #{unet_forward.19} parent=0 // pred_fallthru
    _
  // Predicated region
  $region30: #{unet_forward.19} parent=0 // pred_check
    _
  $region31: #{unet_forward.19} parent=0 // pred_check_branch
    %182 = sbr.rel (0) target = $region33
  $region32: #{unet_forward.19} parent=0 // pred_region
    _
  $region33: #{unet_forward.19} parent=0 // pred_fallthru
    _
  // Predicated region
  $region34: #{unet_forward.19} parent=0 // pred_check
    _
  $region35: #{unet_forward.19} parent=0 // pred_check_branch
    %184 = sbr.rel (0) target = $region37
  $region36: #{unet_forward.19} parent=0 // pred_region
    _
  $region37: #{unet_forward.19} parent=0 // pred_fallthru
    _

// kernel: unet_forward.21
$region0: #{unet_forward.21}
  #allocation0 [shape = 'u32[]', space=smem, size = 0x4, offset = 0x4, fixed_abs, tag = 'smem constant byte address 0x4 - core index']
  #allocation1 [shape = 'u32[144,128]{1,0:T(1,128)}', space=vmem, size = 0x12000, scoped, tag = 'internal scratch']
  %s0 = inlined_call_operand.vmem [shape: bf16[64,50], index: 0, kind: input, shape index: {}]
  %s1 = inlined_call_operand.vmem [shape: bf16[32,64], index: 1, kind: input, shape index: {}]
  %s2 = inlined_call_operand.vmem [shape: f32[32,1], index: 2, kind: input, shape index: {}]
  %s3 = inlined_call_operand.vmem [shape: bf16[32,50], index: 3, kind: output, shape index: {}]
  %s4 = sld [smem:[#allocation0]]
  $region22: #{unet_forward.21} parent=0
    _
  %s6 = ssub.s32 1, %s4
  %s7 = scalar_select 0, %s6, %s4
  // Predicated region
  $region2: #{unet_forward.21} parent=0 // pred_check
    _
  $region3: #{unet_forward.21} parent=0 // pred_check_branch
    %9 = sbr.rel (0) target = $region5
  $region4: #{unet_forward.21} parent=0 // pred_region
    _
  $region5: #{unet_forward.21} parent=0 // pred_fallthru
    _
  // Predicated region
  $region6: #{unet_forward.21} parent=0 // pred_check
    _
  $region7: #{unet_forward.21} parent=0 // pred_check_branch
    %11 = sbr.rel (0) target = $region9
  $region8: #{unet_forward.21} parent=0 // pred_region
    _
  $region9: #{unet_forward.21} parent=0 // pred_fallthru
    _
  // Predicated region
  $region10: #{unet_forward.21} parent=0 // pred_check
    _
  $region11: #{unet_forward.21} parent=0 // pred_check_branch
    %13 = sbr.rel (0) target = $region13
  $region12: #{unet_forward.21} parent=0 // pred_region
    _
  $region13: #{unet_forward.21} parent=0 // pred_fallthru
    _
  %v15 = vld [vmem:[%s1] sm:$0xf]
  %v16 = vld [vmem:[%s1 + $0x4] sm:$0xf]
  %v17 = vld [vmem:[%s1 + $0x8] sm:$0xf]
  %v18 = vld [vmem:[%s1 + $0xc] sm:$0xf]
  %v19 = vld [vmem:[%s0] sm:$0xf]
  %v20 = vld [vmem:[%s0 + $0x4] sm:$0xf]
  %v21 = vld [vmem:[%s0 + $0x8] sm:$0xf]
  %v22 = vld [vmem:[%s0 + $0xc] sm:$0xf]
  %v23 = vld [vmem:[%s0 + $0x10] sm:$0xf]
  %v24 = vld [vmem:[%s0 + $0x14] sm:$0xf]
  %v25 = vld [vmem:[%s0 + $0x18] sm:$0xf]
  %v26 = vld [vmem:[%s0 + $0x1c] sm:$0xf]
  %v27 = vld [vmem:[%s2] sm:$0xff]
  %v28 = vld [vmem:[%s2 + $0x8] sm:$0xff]
  %v29 = vld [vmem:[%s2 + $0x10] sm:$0xff]
  %v30 = vld [vmem:[%s2 + $0x18] sm:$0xff]
  %32 = vset.pattern.permute.xlu0 0
  %33 = vperm.xlu0 %32, %v27
  %v34 = vpop.permute.xlu0 %33
  %37 = vset.pattern.permute.xlu0 0
  %38 = vperm.xlu0 %37, %v28
  %v39 = vpop.permute.xlu0 %38
  %42 = vset.pattern.permute.xlu0 0
  %43 = vperm.xlu0 %42, %v29
  %v44 = vpop.permute.xlu0 %43
  %47 = vset.pattern.permute.xlu0 0
  %48 = vperm.xlu0 %47, %v30
  %v49 = vpop.permute.xlu0 %48
  %v55 = vunpack.c.l.b16 %v15
  %v56 = vunpack.c.l.b16 %v16
  %v57 = vunpack.c.l.b16 %v17
  %v58 = vunpack.c.l.b16 %v18
  %v59 = vpack.c.b16 %v56, %v55
  %v60 = vpack.c.b16 %v58, %v57
  %v69 = vunpack.c.l.b16 %v19
  %v70 = vunpack.c.l.b16 %v20
  %v71 = vunpack.c.l.b16 %v21
  %v72 = vunpack.c.l.b16 %v22
  %v73 = vunpack.c.l.b16 %v23
  %v74 = vunpack.c.l.b16 %v24
  %v75 = vunpack.c.l.b16 %v25
  %v76 = vunpack.c.l.b16 %v26
  %v77 = vpack.c.b16 %v70, %v69
  %v78 = vpack.c.b16 %v72, %v71
  %v79 = vpack.c.b16 %v74, %v73
  %v80 = vpack.c.b16 %v76, %v75
  %vm85 = vcmask 523264
  %v87 = vsel %vm85, %v59, 0
  %v90 = vsel %vm85, %v60, 0
  %92 = vmatprep.subr.bf16.mxu0 0
  %93 = vmatpush1.bf16.msra.mxu0 %v77
  %94 = vmatprep.subr.bf16.mxu0 0
  %95 = vmatpush1.bf16.msra.mxu0 %v78
  %96 = vmatprep.subr.bf16.mxu0 0
  %97 = vmatpush1.bf16.msra.mxu0 %v79
  %98 = vmatprep.subr.bf16.mxu0 0
  %99 = vmatpush1.bf16.msra.mxu0 %v80
  %100 = vmatprep.subr.bf16.mxu0 0
  %101 = vmatpush1.bf16.msra.mxu0 0
  %102 = vmatprep.subr.bf16.mxu0 0
  %103 = vmatpush1.bf16.msra.mxu0 0
  %104 = vmatprep.subr.bf16.mxu0 0
  %105 = vmatpush1.bf16.msra.mxu0 0
  %106 = vmatprep.subr.bf16.mxu0 0
  %107 = vmatpush1.bf16.msra.mxu0 0
  %108 = vmatprep.subr.bf16.mxu0 0
  %109 = vmatpush1.bf16.msra.mxu0 0
  %110 = vmatprep.subr.bf16.mxu0 0
  %111 = vmatpush1.bf16.msra.mxu0 0
  %112 = vmatprep.subr.bf16.mxu0 0
  %113 = vmatpush1.bf16.msra.mxu0 0
  %114 = vmatprep.subr.bf16.mxu0 0
  %115 = vmatpush1.bf16.msra.mxu0 0
  %116 = vmatprep.subr.bf16.mxu0 0
  %117 = vmatpush1.bf16.msra.mxu0 0
  %118 = vmatprep.subr.bf16.mxu0 0
  %119 = vmatpush1.bf16.msra.mxu0 0
  %120 = vmatprep.subr.bf16.mxu0 0
  %121 = vmatpush1.bf16.msra.mxu0 0
  %122 = vmatprep.subr.bf16.mxu0 0
  %123 = vmatpush1.bf16.msra.mxu0 0
  %124 = vmatprep.mubr.bf16.mxu0 0
  %125 = vmatmul.mubr.bf16.gmra.mrb[0].mxu0 %v87
  %v126 = vpop.f32.mrb[0].mxu0
  %v127 = vadd.f32 %v34, %v126
  %v128 = vpop.f32.mrb[0].mxu0
  %v129 = vpop.f32.mrb[0].mxu0
  %v130 = vadd.f32 %v39, %v129
  %v131 = vpop.f32.mrb[0].mxu0
  %132 = vmatprep.mubr.bf16.mxu0 0
  %133 = vmatmul.mubr.bf16.gmra.mrb[0].mxu0 %v90
  %v134 = vpop.f32.mrb[0].mxu0
  %v135 = vadd.f32 %v44, %v134
  %v136 = vpop.f32.mrb[0].mxu0
  %v137 = vpop.f32.mrb[0].mxu0
  %v138 = vadd.f32 %v49, %v137
  %v139 = vpop.f32.mrb[0].mxu0
  %140 = vdwg.mxu0
  %v141 = vpack.c.bf16 %v130, %v127
  %v142 = vpack.c.bf16 %v138, %v135
  %v145 = vunpack.c.l.b16 %v141
  %v146 = vunpack.c.h.b16 %v141
  %v147 = vunpack.c.l.b16 %v142
  %v148 = vunpack.c.h.b16 %v142
  %v149 = vpack.c.b16 %v145, %v145
  %v150 = vpack.c.b16 %v146, %v146
  %v151 = vpack.c.b16 %v147, %v147
  %v152 = vpack.c.b16 %v148, %v148
  %vm157 = vcmask 404480
  %158 = vst.msk [vmem:[%s3] sm:$0xf] %vm157, %v149
  %159 = vst.msk [vmem:[%s3 + $0x4] sm:$0xf] %vm157, %v150
  %160 = vst.msk [vmem:[%s3 + $0x8] sm:$0xf] %vm157, %v151
  %161 = vst.msk [vmem:[%s3 + $0xc] sm:$0xf] %vm157, %v152
  // Predicated region
  $region14: #{unet_forward.21} parent=0 // pred_check
    _
  $region15: #{unet_forward.21} parent=0 // pred_check_branch
    %163 = sbr.rel (0) target = $region17
  $region16: #{unet_forward.21} parent=0 // pred_region
    _
  $region17: #{unet_forward.21} parent=0 // pred_fallthru
    _
  // Predicated region
  $region18: #{unet_forward.21} parent=0 // pred_check
    _
  $region19: #{unet_forward.21} parent=0 // pred_check_branch
    %165 = sbr.rel (0) target = $region21
  $region20: #{unet_forward.21} parent=0 // pred_region
    _
  $region21: #{unet_forward.21} parent=0 // pred_fallthru
    _

// kernel: unet_forward.22
$region0: #{unet_forward.22}
  #allocation0 [shape = 'u32[]', space=smem, size = 0x4, offset = 0x4, fixed_abs, tag = 'smem constant byte address 0x4 - core index']
  #allocation1 [shape = 'u32[144,128]{1,0:T(1,128)}', space=vmem, size = 0x12000, scoped, tag = 'internal scratch']
  %s0 = inlined_call_operand.vmem [shape: bf16[8,128], index: 0, kind: input, shape index: {}]
  %s1 = inlined_call_operand.vmem [shape: f32[8,128], index: 1, kind: output, shape index: {0}]
  %s2 = inlined_call_operand.vmem [shape: f32[8,128], index: 2, kind: output, shape index: {1}]
  %3 = xla_tuple %s1, %s2
  %s4 = sld [smem:[#allocation0]]
  $region22: #{unet_forward.22} parent=0
    _
  %s6 = ssub.s32 1, %s4
  %s7 = scalar_select 0, %s6, %s4
  // Predicated region
  $region2: #{unet_forward.22} parent=0 // pred_check
    _
  $region3: #{unet_forward.22} parent=0 // pred_check_branch
    %9 = sbr.rel (0) target = $region5
  $region4: #{unet_forward.22} parent=0 // pred_region
    _
  $region5: #{unet_forward.22} parent=0 // pred_fallthru
    _
  %v10 = vld [vmem:[%s0] sm:$0xf]
  %v11 = vunpack.c.l.bf16 %v10
  %12 = vadd.xlane.f32.xlu0 %v11
  %v13 = vpop.xlane.xlu0 %12
  %v14 = vmul.f32 %v11, %v11
  %15 = vadd.xlane.f32.xlu0 %v14
  %v16 = vpop.xlane.xlu0 %15
  %17 = vst [vmem:[%s1] sm:$0xff] %v13
  %18 = vst [vmem:[%s2] sm:$0xff] %v16
  // Predicated region
  $region6: #{unet_forward.22} parent=0 // pred_check
    _
  $region7: #{unet_forward.22} parent=0 // pred_check_branch
    %20 = sbr.rel (0) target = $region9
  $region8: #{unet_forward.22} parent=0 // pred_region
    _
  $region9: #{unet_forward.22} parent=0 // pred_fallthru
    _
  // Predicated region
  $region10: #{unet_forward.22} parent=0 // pred_check
    _
  $region11: #{unet_forward.22} parent=0 // pred_check_branch
    %22 = sbr.rel (0) target = $region13
  $region12: #{unet_forward.22} parent=0 // pred_region
    _
  $region13: #{unet_forward.22} parent=0 // pred_fallthru
    _
  // Predicated region
  $region14: #{unet_forward.22} parent=0 // pred_check
    _
  $region15: #{unet_forward.22} parent=0 // pred_check_branch
    %24 = sbr.rel (0) target = $region17
  $region16: #{unet_forward.22} parent=0 // pred_region
    _
  $region17: #{unet_forward.22} parent=0 // pred_fallthru
    _
  // Predicated region
  $region18: #{unet_forward.22} parent=0 // pred_check
    _
  $region19: #{unet_forward.22} parent=0 // pred_check_branch
    %26 = sbr.rel (0) target = $region21
  $region20: #{unet_forward.22} parent=0 // pred_region
    _
  $region21: #{unet_forward.22} parent=0 // pred_fallthru
    _

// kernel: unet_forward.24
$region0: #{unet_forward.24}
  #allocation0 [shape = 'u32[]', space=smem, size = 0x4, offset = 0x4, fixed_abs, tag = 'smem constant byte address 0x4 - core index']
  #allocation1 [shape = 'u32[144,128]{1,0:T(1,128)}', space=vmem, size = 0x12000, scoped, tag = 'internal scratch']
  %s0 = inlined_call_operand.vmem [shape: bf16[64,162], index: 0, kind: input, shape index: {}]
  %s1 = inlined_call_operand.vmem [shape: bf16[16,64], index: 1, kind: input, shape index: {}]
  %s2 = inlined_call_operand.vmem [shape: f32[16,1], index: 2, kind: input, shape index: {}]
  %s3 = inlined_call_operand.vmem [shape: bf16[16,162], index: 3, kind: output, shape index: {}]
  %s4 = sld [smem:[#allocation0]]
  $region22: #{unet_forward.24} parent=0
    _
  %s6 = ssub.s32 1, %s4
  %s7 = scalar_select 0, %s6, %s4
  // Predicated region
  $region2: #{unet_forward.24} parent=0 // pred_check
    _
  $region3: #{unet_forward.24} parent=0 // pred_check_branch
    %9 = sbr.rel (0) target = $region5
  $region4: #{unet_forward.24} parent=0 // pred_region
    _
  $region5: #{unet_forward.24} parent=0 // pred_fallthru
    _
  // Predicated region
  $region6: #{unet_forward.24} parent=0 // pred_check
    _
  $region7: #{unet_forward.24} parent=0 // pred_check_branch
    %11 = sbr.rel (0) target = $region9
  $region8: #{unet_forward.24} parent=0 // pred_region
    _
  $region9: #{unet_forward.24} parent=0 // pred_fallthru
    _
  // Predicated region
  $region10: #{unet_forward.24} parent=0 // pred_check
    _
  $region11: #{unet_forward.24} parent=0 // pred_check_branch
    %13 = sbr.rel (0) target = $region13
  $region12: #{unet_forward.24} parent=0 // pred_region
    _
  $region13: #{unet_forward.24} parent=0 // pred_fallthru
    _
  %v15 = vld [vmem:[%s1] sm:$0xf]
  %v16 = vld [vmem:[%s1 + $0x4] sm:$0xf]
  %v17 = vld [vmem:[%s0] sm:$0xff]
  %v18 = vld [vmem:[%s0 + $0x8] sm:$0xff]
  %v19 = vld [vmem:[%s0 + $0x10] sm:$0xff]
  %v20 = vld [vmem:[%s0 + $0x18] sm:$0xff]
  %v21 = vld [vmem:[%s0 + $0x20] sm:$0xff]
  %v22 = vld [vmem:[%s0 + $0x28] sm:$0xff]
  %v23 = vld [vmem:[%s0 + $0x30] sm:$0xff]
  %v24 = vld [vmem:[%s0 + $0x38] sm:$0xff]
  %v25 = vld [vmem:[%s2] sm:$0xff]
  %v26 = vld [vmem:[%s2 + $0x8] sm:$0xff]
  %28 = vset.pattern.permute.xlu0 0
  %29 = vperm.xlu0 %28, %v25
  %v30 = vpop.permute.xlu0 %29
  %33 = vset.pattern.permute.xlu0 0
  %34 = vperm.xlu0 %33, %v26
  %v35 = vpop.permute.xlu0 %34
  %v39 = vunpack.c.l.b16 %v15
  %v40 = vunpack.c.l.b16 %v16
  %v41 = vpack.c.b16 %v40, %v39
  %v50 = vunpack.c.l.b16 %v17
  %v51 = vunpack.c.h.b16 %v17
  %v52 = vunpack.c.l.b16 %v18
  %v53 = vunpack.c.h.b16 %v18
  %v54 = vunpack.c.l.b16 %v19
  %v55 = vunpack.c.h.b16 %v19
  %v56 = vunpack.c.l.b16 %v20
  %v57 = vunpack.c.h.b16 %v20
  %v58 = vunpack.c.l.b16 %v21
  %v59 = vunpack.c.h.b16 %v21
  %v60 = vunpack.c.l.b16 %v22
  %v61 = vunpack.c.h.b16 %v22
  %v62 = vunpack.c.l.b16 %v23
  %v63 = vunpack.c.h.b16 %v23
  %v64 = vunpack.c.l.b16 %v24
  %v65 = vunpack.c.h.b16 %v24
  %v66 = vpack.c.b16 %v52, %v50
  %v67 = vpack.c.b16 %v53, %v51
  %v68 = vpack.c.b16 %v56, %v54
  %v69 = vpack.c.b16 %v57, %v55
  %v70 = vpack.c.b16 %v60, %v58
  %v71 = vpack.c.b16 %v61, %v59
  %v72 = vpack.c.b16 %v64, %v62
  %v73 = vpack.c.b16 %v65, %v63
  %vm82 = vcmask 523264
  %v84 = vsel %vm82, %v41, 0
  %86 = vmatprep.subr.bf16.mxu0 %v67
  %87 = vmatpush1.bf16.msra.mxu0 %v66
  %88 = vmatprep.subr.bf16.mxu0 %v69
  %89 = vmatpush1.bf16.msra.mxu0 %v68
  %90 = vmatprep.subr.bf16.mxu0 %v71
  %91 = vmatpush1.bf16.msra.mxu0 %v70
  %92 = vmatprep.subr.bf16.mxu0 %v73
  %93 = vmatpush1.bf16.msra.mxu0 %v72
  %94 = vmatprep.subr.bf16.mxu0 0
  %95 = vmatpush1.bf16.msra.mxu0 0
  %96 = vmatprep.subr.bf16.mxu0 0
  %97 = vmatpush1.bf16.msra.mxu0 0
  %98 = vmatprep.subr.bf16.mxu0 0
  %99 = vmatpush1.bf16.msra.mxu0 0
  %100 = vmatprep.subr.bf16.mxu0 0
  %101 = vmatpush1.bf16.msra.mxu0 0
  %102 = vmatprep.subr.bf16.mxu0 0
  %103 = vmatpush1.bf16.msra.mxu0 0
  %104 = vmatprep.subr.bf16.mxu0 0
  %105 = vmatpush1.bf16.msra.mxu0 0
  %106 = vmatprep.subr.bf16.mxu0 0
  %107 = vmatpush1.bf16.msra.mxu0 0
  %108 = vmatprep.subr.bf16.mxu0 0
  %109 = vmatpush1.bf16.msra.mxu0 0
  %110 = vmatprep.subr.bf16.mxu0 0
  %111 = vmatpush1.bf16.msra.mxu0 0
  %112 = vmatprep.subr.bf16.mxu0 0
  %113 = vmatpush1.bf16.msra.mxu0 0
  %114 = vmatprep.subr.bf16.mxu0 0
  %115 = vmatpush1.bf16.msra.mxu0 0
  %116 = vmatprep.subr.bf16.mxu0 0
  %117 = vmatpush1.bf16.msra.mxu0 0
  %118 = vmatprep.mubr.bf16.mxu0 0
  %119 = vmatmul.mubr.bf16.gmra.mrb[0].mxu0 %v84
  %v120 = vpop.f32.mrb[0].mxu0
  %v121 = vadd.f32 %v30, %v120
  %v122 = vpop.f32.mrb[0].mxu0
  %v123 = vadd.f32 %v30, %v122
  %v124 = vpop.f32.mrb[0].mxu0
  %v125 = vadd.f32 %v35, %v124
  %v126 = vpop.f32.mrb[0].mxu0
  %v127 = vadd.f32 %v35, %v126
  %128 = vdwg.mxu0
  %v129 = vpack.c.bf16 %v125, %v121
  %v130 = vpack.c.bf16 %v127, %v123
  %v133 = vunpack.c.l.b16 %v129
  %v134 = vunpack.c.l.b16 %v130
  %v135 = vunpack.c.h.b16 %v129
  %v136 = vunpack.c.h.b16 %v130
  %v137 = vpack.c.b16 %v134, %v133
  %v138 = vpack.c.b16 %v136, %v135
  %vm141 = vcmask 1043456
  %vm142 = vcmask 277508
  %vm143 = vmor %vm142, %vm141
  %144 = vst.msk [vmem:[%s3] sm:$0xff] %vm143, %v137
  %145 = vst.msk [vmem:[%s3 + $0x8] sm:$0xff] %vm143, %v138
  // Predicated region
  $region14: #{unet_forward.24} parent=0 // pred_check
    _
  $region15: #{unet_forward.24} parent=0 // pred_check_branch
    %147 = sbr.rel (0) target = $region17
  $region16: #{unet_forward.24} parent=0 // pred_region
    _
  $region17: #{unet_forward.24} parent=0 // pred_fallthru
    _
  // Predicated region
  $region18: #{unet_forward.24} parent=0 // pred_check
    _
  $region19: #{unet_forward.24} parent=0 // pred_check_branch
    %149 = sbr.rel (0) target = $region21
  $region20: #{unet_forward.24} parent=0 // pred_region
    _
  $region21: #{unet_forward.24} parent=0 // pred_fallthru
    _

// kernel: unet_forward.25
$region0: #{unet_forward.25}
  #allocation0 [shape = 'u32[]', space=smem, size = 0x4, offset = 0x4, fixed_abs, tag = 'smem constant byte address 0x4 - core index']
  #allocation1 [shape = 'u32[144,128]{1,0:T(1,128)}', space=vmem, size = 0x12000, scoped, tag = 'internal scratch']
  %s0 = inlined_call_operand.vmem [shape: bf16[4,512], index: 0, kind: input, shape index: {}]
  %s1 = inlined_call_operand.vmem [shape: f32[4,128], index: 1, kind: output, shape index: {0}]
  %s2 = inlined_call_operand.vmem [shape: f32[4,128], index: 2, kind: output, shape index: {1}]
  %3 = xla_tuple %s1, %s2
  %s4 = sld [smem:[#allocation0]]
  $region22: #{unet_forward.25} parent=0
    _
  %s6 = ssub.s32 1, %s4
  %s7 = scalar_select 0, %s6, %s4
  // Predicated region
  $region2: #{unet_forward.25} parent=0 // pred_check
    _
  $region3: #{unet_forward.25} parent=0 // pred_check_branch
    %9 = sbr.rel (0) target = $region5
  $region4: #{unet_forward.25} parent=0 // pred_region
    _
  $region5: #{unet_forward.25} parent=0 // pred_fallthru
    _
  %v10 = vld [vmem:[%s0] sm:$0xff]
  %v11 = vunpack.c.l.bf16 %v10
  %v12 = vunpack.c.h.bf16 %v10
  %v15 = vcombine.high %v11, %v11
  %v16 = vcombine.high %v12, %v12
  %vm19 = vcmask 1043456
  %v20 = vsel %vm19, %v11, 0.0
  %v21 = vsel %vm19, %v15, 0.0
  %v22 = vadd.f32 %v20, %v21
  %v23 = vsel %vm19, %v12, 0.0
  %v24 = vadd.f32 %v22, %v23
  %v25 = vsel %vm19, %v16, 0.0
  %v26 = vadd.f32 %v24, %v25
  %27 = vadd.xlane.f32.xlu0 %v26
  %v28 = vpop.xlane.xlu0 %27
  %v29 = vmul.f32 %v11, %v11
  %v30 = vmul.f32 %v12, %v12
  %v33 = vcombine.high %v29, %v29
  %v34 = vcombine.high %v30, %v30
  %v37 = vsel %vm19, %v29, 0.0
  %v38 = vsel %vm19, %v33, 0.0
  %v39 = vadd.f32 %v37, %v38
  %v40 = vsel %vm19, %v30, 0.0
  %v41 = vadd.f32 %v39, %v40
  %v42 = vsel %vm19, %v34, 0.0
  %v43 = vadd.f32 %v41, %v42
  %44 = vadd.xlane.f32.xlu0 %v43
  %v45 = vpop.xlane.xlu0 %44
  %46 = vst [vmem:[%s1] sm:$0xf] %v28
  %47 = vst [vmem:[%s2] sm:$0xf] %v45
  // Predicated region
  $region6: #{unet_forward.25} parent=0 // pred_check
    _
  $region7: #{unet_forward.25} parent=0 // pred_check_branch
    %49 = sbr.rel (0) target = $region9
  $region8: #{unet_forward.25} parent=0 // pred_region
    _
  $region9: #{unet_forward.25} parent=0 // pred_fallthru
    _
  // Predicated region
  $region10: #{unet_forward.25} parent=0 // pred_check
    _
  $region11: #{unet_forward.25} parent=0 // pred_check_branch
    %51 = sbr.rel (0) target = $region13
  $region12: #{unet_forward.25} parent=0 // pred_region
    _
  $region13: #{unet_forward.25} parent=0 // pred_fallthru
    _
  // Predicated region
  $region14: #{unet_forward.25} parent=0 // pred_check
    _
  $region15: #{unet_forward.25} parent=0 // pred_check_branch
    %53 = sbr.rel (0) target = $region17
  $region16: #{unet_forward.25} parent=0 // pred_region
    _
  $region17: #{unet_forward.25} parent=0 // pred_fallthru
    _
  // Predicated region
  $region18: #{unet_forward.25} parent=0 // pred_check
    _
  $region19: #{unet_forward.25} parent=0 // pred_check_branch
    %55 = sbr.rel (0) target = $region21
  $region20: #{unet_forward.25} parent=0 // pred_region
    _
  $region21: #{unet_forward.25} parent=0 // pred_fallthru
    _

// kernel: unet_forward.27
$region0: #{unet_forward.27}
  #allocation0 [shape = 'u32[]', space=smem, size = 0x4, offset = 0x4, fixed_abs, tag = 'smem constant byte address 0x4 - core index']
  #allocation1 [shape = 'u32[144,128]{1,0:T(1,128)}', space=vmem, size = 0x12000, scoped, tag = 'internal scratch']
  %s0 = inlined_call_operand.vmem [shape: bf16[72,512], index: 0, kind: input, shape index: {}]
  %s1 = inlined_call_operand.vmem [shape: bf16[4,72], index: 1, kind: input, shape index: {}]
  %s2 = inlined_call_operand.vmem [shape: f32[4,1], index: 2, kind: input, shape index: {}]
  %s3 = inlined_call_operand.vmem [shape: bf16[4,512], index: 3, kind: output, shape index: {0}]
  %s4 = inlined_call_operand.vmem [shape: f32[4,128], index: 4, kind: output, shape index: {1}]
  %s5 = inlined_call_operand.vmem [shape: f32[4,128], index: 5, kind: output, shape index: {2}]
  %6 = xla_tuple %s3, %s4, %s5
  %s7 = sld [smem:[#allocation0]]
  $region38: #{unet_forward.27} parent=0
    _
  %s9 = ssub.s32 1, %s7
  %s10 = scalar_select 0, %s9, %s7
  // Predicated region
  $region2: #{unet_forward.27} parent=0 // pred_check
    _
  $region3: #{unet_forward.27} parent=0 // pred_check_branch
    %12 = sbr.rel (0) target = $region5
  $region4: #{unet_forward.27} parent=0 // pred_region
    _
  $region5: #{unet_forward.27} parent=0 // pred_fallthru
    _
  // Predicated region
  $region6: #{unet_forward.27} parent=0 // pred_check
    _
  $region7: #{unet_forward.27} parent=0 // pred_check_branch
    %14 = sbr.rel (0) target = $region9
  $region8: #{unet_forward.27} parent=0 // pred_region
    _
  $region9: #{unet_forward.27} parent=0 // pred_fallthru
    _
  // Predicated region
  $region10: #{unet_forward.27} parent=0 // pred_check
    _
  $region11: #{unet_forward.27} parent=0 // pred_check_branch
    %16 = sbr.rel (0) target = $region13
  $region12: #{unet_forward.27} parent=0 // pred_region
    _
  $region13: #{unet_forward.27} parent=0 // pred_fallthru
    _
  %v18 = vld [vmem:[%s1] sm:$0x3]
  %v19 = vld [vmem:[%s0] sm:$0xff]
  %v20 = vld [vmem:[%s0 + $0x8] sm:$0xff]
  %v21 = vld [vmem:[%s0 + $0x10] sm:$0xff]
  %v22 = vld [vmem:[%s0 + $0x18] sm:$0xff]
  %v23 = vld [vmem:[%s0 + $0x20] sm:$0xff]
  %v24 = vld [vmem:[%s0 + $0x28] sm:$0xff]
  %v25 = vld [vmem:[%s0 + $0x30] sm:$0xff]
  %v26 = vld [vmem:[%s0 + $0x38] sm:$0xff]
  %v27 = vld [vmem:[%s0 + $0x40] sm:$0xff]
  %v28 = vld [vmem:[%s0 + $0x48] sm:$0xff]
  %v29 = vld [vmem:[%s0 + $0x50] sm:$0xff]
  %v30 = vld [vmem:[%s0 + $0x58] sm:$0xff]
  %v31 = vld [vmem:[%s0 + $0x60] sm:$0xff]
  %v32 = vld [vmem:[%s0 + $0x68] sm:$0xff]
  %v33 = vld [vmem:[%s0 + $0x70] sm:$0xff]
  %v34 = vld [vmem:[%s0 + $0x78] sm:$0xff]
  %v35 = vld [vmem:[%s0 + $0x80] sm:$0xff]
  %v36 = vld [vmem:[%s0 + $0x88] sm:$0xff]
  %v37 = vld [vmem:[%s2] sm:$0xf]
  %39 = vset.pattern.permute.xlu0 0
  %40 = vperm.xlu0 %39, %v37
  %v41 = vpop.permute.xlu0 %40
  %v61 = vunpack.c.l.b16 %v19
  %v62 = vunpack.c.h.b16 %v19
  %v63 = vunpack.c.l.b16 %v20
  %v64 = vunpack.c.h.b16 %v20
  %v65 = vunpack.c.l.b16 %v21
  %v66 = vunpack.c.h.b16 %v21
  %v67 = vunpack.c.l.b16 %v22
  %v68 = vunpack.c.h.b16 %v22
  %v69 = vunpack.c.l.b16 %v23
  %v70 = vunpack.c.h.b16 %v23
  %v71 = vunpack.c.l.b16 %v24
  %v72 = vunpack.c.h.b16 %v24
  %v73 = vunpack.c.l.b16 %v25
  %v74 = vunpack.c.h.b16 %v25
  %v75 = vunpack.c.l.b16 %v26
  %v76 = vunpack.c.h.b16 %v26
  %v77 = vunpack.c.l.b16 %v27
  %v78 = vunpack.c.h.b16 %v27
  %v79 = vunpack.c.l.b16 %v28
  %v80 = vunpack.c.h.b16 %v28
  %v81 = vunpack.c.l.b16 %v29
  %v82 = vunpack.c.h.b16 %v29
  %v83 = vunpack.c.l.b16 %v30
  %v84 = vunpack.c.h.b16 %v30
  %v85 = vunpack.c.l.b16 %v31
  %v86 = vunpack.c.h.b16 %v31
  %v87 = vunpack.c.l.b16 %v32
  %v88 = vunpack.c.h.b16 %v32
  %v89 = vunpack.c.l.b16 %v33
  %v90 = vunpack.c.h.b16 %v33
  %v91 = vunpack.c.l.b16 %v34
  %v92 = vunpack.c.h.b16 %v34
  %v93 = vunpack.c.l.b16 %v35
  %v94 = vunpack.c.h.b16 %v35
  %v95 = vunpack.c.l.b16 %v36
  %v96 = vunpack.c.h.b16 %v36
  %v97 = vpack.c.b16 %v65, %v61
  %v98 = vpack.c.b16 %v66, %v62
  %v99 = vpack.c.b16 %v67, %v63
  %v100 = vpack.c.b16 %v68, %v64
  %v101 = vpack.c.b16 %v73, %v69
  %v102 = vpack.c.b16 %v74, %v70
  %v103 = vpack.c.b16 %v75, %v71
  %v104 = vpack.c.b16 %v76, %v72
  %v105 = vpack.c.b16 %v81, %v77
  %v106 = vpack.c.b16 %v82, %v78
  %v107 = vpack.c.b16 %v83, %v79
  %v108 = vpack.c.b16 %v84, %v80
  %v109 = vpack.c.b16 %v89, %v85
  %v110 = vpack.c.b16 %v90, %v86
  %v111 = vpack.c.b16 %v91, %v87
  %v112 = vpack.c.b16 %v92, %v88
  %v113 = vpack.c.b16 %v93, %v93
  %v114 = vpack.c.b16 %v94, %v94
  %v115 = vpack.c.b16 %v95, %v95
  %v116 = vpack.c.b16 %v96, %v96
  %vm133 = vcmask 588800
  %v135 = vsel %vm133, %v18, 0
  %vm137 = vcmask 1043456
  %v139 = vsel %vm137, %v113, 0
  %v142 = vsel %vm137, %v114, 0
  %v145 = vsel %vm137, %v115, 0
  %v148 = vsel %vm137, %v116, 0
  %150 = vmatprep.subr.bf16.mxu0 %v98
  %151 = vmatpush1.bf16.msra.mxu0 %v97
  %152 = vmatprep.subr.bf16.mxu0 %v102
  %153 = vmatpush1.bf16.msra.mxu0 %v101
  %154 = vmatprep.subr.bf16.mxu0 %v106
  %155 = vmatpush1.bf16.msra.mxu0 %v105
  %156 = vmatprep.subr.bf16.mxu0 %v110
  %157 = vmatpush1.bf16.msra.mxu0 %v109
  %158 = vmatprep.subr.bf16.mxu0 %v142
  %159 = vmatpush1.bf16.msra.mxu0 %v139
  %160 = vmatprep.subr.bf16.mxu0 0
  %161 = vmatpush1.bf16.msra.mxu0 0
  %162 = vmatprep.subr.bf16.mxu0 0
  %163 = vmatpush1.bf16.msra.mxu0 0
  %164 = vmatprep.subr.bf16.mxu0 0
  %165 = vmatpush1.bf16.msra.mxu0 0
  %166 = vmatprep.subr.bf16.mxu0 0
  %167 = vmatpush1.bf16.msra.mxu0 0
  %168 = vmatprep.subr.bf16.mxu0 0
  %169 = vmatpush1.bf16.msra.mxu0 0
  %170 = vmatprep.subr.bf16.mxu0 0
  %171 = vmatpush1.bf16.msra.mxu0 0
  %172 = vmatprep.subr.bf16.mxu0 0
  %173 = vmatpush1.bf16.msra.mxu0 0
  %174 = vmatprep.subr.bf16.mxu0 0
  %175 = vmatpush1.bf16.msra.mxu0 0
  %176 = vmatprep.subr.bf16.mxu0 0
  %177 = vmatpush1.bf16.msra.mxu0 0
  %178 = vmatprep.subr.bf16.mxu0 0
  %179 = vmatpush1.bf16.msra.mxu0 0
  %180 = vmatprep.subr.bf16.mxu0 0
  %181 = vmatpush1.bf16.msra.mxu0 0
  %182 = vmatprep.mubr.bf16.mxu0 0
  %183 = vmatmul.mubr.bf16.gmra.mrb[0].mxu0 %v135
  %v184 = vpop.f32.mrb[0].mxu0
  %v185 = vadd.f32 %v41, %v184
  %v186 = vpop.f32.mrb[0].mxu0
  %v187 = vadd.f32 %v41, %v186
  %v188 = vpop.f32.mrb[0].mxu0
  %v189 = vpop.f32.mrb[0].mxu0
  %190 = vdwg.mxu0
  %191 = vmatprep.subr.bf16.mxu0 %v100
  %192 = vmatpush1.bf16.msra.mxu0 %v99
  %193 = vmatprep.subr.bf16.mxu0 %v104
  %194 = vmatpush1.bf16.msra.mxu0 %v103
  %195 = vmatprep.subr.bf16.mxu0 %v108
  %196 = vmatpush1.bf16.msra.mxu0 %v107
  %197 = vmatprep.subr.bf16.mxu0 %v112
  %198 = vmatpush1.bf16.msra.mxu0 %v111
  %199 = vmatprep.subr.bf16.mxu0 %v148
  %200 = vmatpush1.bf16.msra.mxu0 %v145
  %201 = vmatprep.subr.bf16.mxu0 0
  %202 = vmatpush1.bf16.msra.mxu0 0
  %203 = vmatprep.subr.bf16.mxu0 0
  %204 = vmatpush1.bf16.msra.mxu0 0
  %205 = vmatprep.subr.bf16.mxu0 0
  %206 = vmatpush1.bf16.msra.mxu0 0
  %207 = vmatprep.subr.bf16.mxu0 0
  %208 = vmatpush1.bf16.msra.mxu0 0
  %209 = vmatprep.subr.bf16.mxu0 0
  %210 = vmatpush1.bf16.msra.mxu0 0
  %211 = vmatprep.subr.bf16.mxu0 0
  %212 = vmatpush1.bf16.msra.mxu0 0
  %213 = vmatprep.subr.bf16.mxu0 0
  %214 = vmatpush1.bf16.msra.mxu0 0
  %215 = vmatprep.subr.bf16.mxu0 0
  %216 = vmatpush1.bf16.msra.mxu0 0
  %217 = vmatprep.subr.bf16.mxu0 0
  %218 = vmatpush1.bf16.msra.mxu0 0
  %219 = vmatprep.subr.bf16.mxu0 0
  %220 = vmatpush1.bf16.msra.mxu0 0
  %221 = vmatprep.subr.bf16.mxu0 0
  %222 = vmatpush1.bf16.msra.mxu0 0
  %223 = vmatprep.mubr.bf16.mxu0 0
  %224 = vmatmul.mubr.bf16.gmra.mrb[0].mxu0 %v135
  %v225 = vpop.f32.mrb[0].mxu0
  %v226 = vadd.f32 %v41, %v225
  %v227 = vpop.f32.mrb[0].mxu0
  %v228 = vadd.f32 %v41, %v227
  %v229 = vpop.f32.mrb[0].mxu0
  %v230 = vpop.f32.mrb[0].mxu0
  %231 = vdwg.mxu0
  %v232 = vsel %vm137, %v185, 0.0
  %v233 = vsel %vm137, %v187, 0.0
  %v234 = vadd.f32 %v232, %v233
  %v235 = vsel %vm137, %v226, 0.0
  %v236 = vadd.f32 %v234, %v235
  %v237 = vsel %vm137, %v228, 0.0
  %v238 = vadd.f32 %v236, %v237
  %239 = vadd.xlane.f32.xlu0 %v238
  %v240 = vpop.xlane.xlu0 %239
  %v241 = vmul.f32 %v185, %v185
  %v242 = vmul.f32 %v187, %v187
  %v243 = vmul.f32 %v226, %v226
  %v244 = vmul.f32 %v228, %v228
  %v245 = vsel %vm137, %v241, 0.0
  %v246 = vsel %vm137, %v242, 0.0
  %v247 = vadd.f32 %v245, %v246
  %v248 = vsel %vm137, %v243, 0.0
  %v249 = vadd.f32 %v247, %v248
  %v250 = vsel %vm137, %v244, 0.0
  %v251 = vadd.f32 %v249, %v250
  %252 = vadd.xlane.f32.xlu0 %v251
  %v253 = vpop.xlane.xlu0 %252
  %254 = vst [vmem:[%s4] sm:$0xf] %v240
  %255 = vst [vmem:[%s5] sm:$0xf] %v253
  %v256 = vpack.c.bf16 %v185, %v185
  %v257 = vpack.c.bf16 %v187, %v187
  %v258 = vpack.c.bf16 %v226, %v226
  %v259 = vpack.c.bf16 %v228, %v228
  %v264 = vcombine.low %v256, %v257
  %v265 = vcombine.low %v258, %v259
  %v267 = vunpack.c.l.s4 1983009808
  %v268 = vunpack.c.0.s8 %v267
  %v269 = vlaneseq
  %v270 = vshrl.u32 %v269, 7
  %v271 = vsub.s32 %v268, %v270
  %v272 = vrot.slane %v264, %v271
  %v274 = vunpack.c.l.s4 1983009808
  %v275 = vunpack.c.0.s8 %v274
  %v276 = vlaneseq
  %v277 = vshrl.u32 %v276, 7
  %v278 = vsub.s32 %v275, %v277
  %v279 = vrot.slane %v265, %v278
  %v280 = vcombine.low %v272, %v279
  %282 = vst [vmem:[%s3] sm:$0xff] %v280
  // Predicated region
  $region14: #{unet_forward.27} parent=0 // pred_check
    _
  $region15: #{unet_forward.27} parent=0 // pred_check_branch
    %284 = sbr.rel (0) target = $region17
  $region16: #{unet_forward.27} parent=0 // pred_region
    _
  $region17: #{unet_forward.27} parent=0 // pred_fallthru
    _
  // Predicated region
  $region18: #{unet_forward.27} parent=0 // pred_check
    _
  $region19: #{unet_forward.27} parent=0 // pred_check_branch
    %286 = sbr.rel (0) target = $region21
  $region20: #{unet_forward.27} parent=0 // pred_region
    _
  $region21: #{unet_forward.27} parent=0 // pred_fallthru
    _
  // Predicated region
  $region22: #{unet_forward.27} parent=0 // pred_check
    _
  $region23: #{unet_forward.27} parent=0 // pred_check_branch
    %288 = sbr.rel (0) target = $region25
  $region24: #{unet_forward.27} parent=0 // pred_region
    _
  $region25: #{unet_forward.27} parent=0 // pred_fallthru
    _
  // Predicated region
  $region26: #{unet_forward.27} parent=0 // pred_check
    _
  $region27: #{unet_forward.27} parent=0 // pred_check_branch
    %290 = sbr.rel (0) target = $region29
  $region28: #{unet_forward.27} parent=0 // pred_region
    _
  $region29: #{unet_forward.27} parent=0 // pred_fallthru
    _
  // Predicated region
  $region30: #{unet_forward.27} parent=0 // pred_check
    _
  $region31: #{unet_forward.27} parent=0 // pred_check_branch
    %292 = sbr.rel (0) target = $region33
  $region32: #{unet_forward.27} parent=0 // pred_region
    _
  $region33: #{unet_forward.27} parent=0 // pred_fallthru
    _
  // Predicated region
  $region34: #{unet_forward.27} parent=0 // pred_check
    _
  $region35: #{unet_forward.27} parent=0 // pred_check_branch
    %294 = sbr.rel (0) target = $region37
  $region36: #{unet_forward.27} parent=0 // pred_region
    _
  $region37: #{unet_forward.27} parent=0 // pred_fallthru
    _

// kernel: unet_forward.29
$region0: #{unet_forward.29}
  #allocation0 [shape = 'u32[]', space=smem, size = 0x4, offset = 0x4, fixed_abs, tag = 'smem constant byte address 0x4 - core index']
  #allocation1 [shape = 'u32[144,128]{1,0:T(1,128)}', space=vmem, size = 0x12000, scoped, tag = 'internal scratch']
  #allocation2 [shape = 'f32[1,1]{1,0:T(1,128)S(1)}', space=vmem, size = 0x200, scoped, tag = 'scoped memory for unet_forward.29']
  %s0 = inlined_call_operand.vmem [shape: bf16[36,512], index: 0, kind: input, shape index: {}]
  %s1 = inlined_call_operand.vmem [shape: bf16[1,36], index: 1, kind: input, shape index: {}]
  %s2 = inlined_call_operand.<no memory space> [shape: f32[1,1], index: 2, kind: input, shape index: {}]
  %s3 = inlined_call_operand.vmem [shape: f32[1,512], index: 3, kind: output, shape index: {}]
  %s4 = sld [smem:[#allocation0]]
  $region22: #{unet_forward.29} parent=0
    _
  %s6 = ssub.s32 1, %s4
  %s7 = scalar_select 0, %s6, %s4
  %v8 = vstv %s2
  %9 = vst [vmem:[#allocation2] sm:$0x1] %v8
  // Predicated region
  $region2: #{unet_forward.29} parent=0 // pred_check
    _
  $region3: #{unet_forward.29} parent=0 // pred_check_branch
    %11 = sbr.rel (0) target = $region5
  $region4: #{unet_forward.29} parent=0 // pred_region
    _
  $region5: #{unet_forward.29} parent=0 // pred_fallthru
    _
  // Predicated region
  $region6: #{unet_forward.29} parent=0 // pred_check
    _
  $region7: #{unet_forward.29} parent=0 // pred_check_branch
    %13 = sbr.rel (0) target = $region9
  $region8: #{unet_forward.29} parent=0 // pred_region
    _
  $region9: #{unet_forward.29} parent=0 // pred_fallthru
    _
  // Predicated region
  $region10: #{unet_forward.29} parent=0 // pred_check
    _
  $region11: #{unet_forward.29} parent=0 // pred_check_branch
    %15 = sbr.rel (0) target = $region13
  $region12: #{unet_forward.29} parent=0 // pred_region
    _
  $region13: #{unet_forward.29} parent=0 // pred_fallthru
    _
  %v17 = vld [vmem:[%s1] sm:$0x1]
  %v18 = vld [vmem:[%s0] sm:$0xff]
  %v19 = vld [vmem:[%s0 + $0x8] sm:$0xff]
  %v20 = vld [vmem:[%s0 + $0x10] sm:$0xff]
  %v21 = vld [vmem:[%s0 + $0x18] sm:$0xff]
  %v22 = vld [vmem:[%s0 + $0x20] sm:$0xff]
  %v23 = vld [vmem:[%s0 + $0x28] sm:$0xff]
  %v24 = vld [vmem:[%s0 + $0x30] sm:$0xff]
  %v25 = vld [vmem:[%s0 + $0x38] sm:$0xff]
  %v26 = vld [vmem:[%s0 + $0x40] sm:$0x33]
  %v27 = vld [vmem:[%s0 + $0x48] sm:$0x33]
  %v28 = vld [vmem:[#allocation2] sm:$0x1]
  %30 = vset.pattern.permute.xlu0 0
  %31 = vperm.xlu0 %30, %v28
  %v32 = vpop.permute.xlu0 %31
  %v34 = vlaneseq
  %v35 = vshrl.u32 %v34, 7
  %v36 = vsub.s32 0, %v35
  %v37 = vrot.slane %v32, %v36
  %v48 = vunpack.c.l.b16 %v18
  %v49 = vunpack.c.h.b16 %v18
  %v50 = vunpack.c.l.b16 %v19
  %v51 = vunpack.c.h.b16 %v19
  %v52 = vunpack.c.l.b16 %v20
  %v53 = vunpack.c.h.b16 %v20
  %v54 = vunpack.c.l.b16 %v21
  %v55 = vunpack.c.h.b16 %v21
  %v56 = vunpack.c.l.b16 %v22
  %v57 = vunpack.c.h.b16 %v22
  %v58 = vunpack.c.l.b16 %v23
  %v59 = vunpack.c.h.b16 %v23
  %v60 = vunpack.c.l.b16 %v24
  %v61 = vunpack.c.h.b16 %v24
  %v62 = vunpack.c.l.b16 %v25
  %v63 = vunpack.c.h.b16 %v25
  %v64 = vunpack.c.l.b16 %v26
  %v65 = vunpack.c.h.b16 %v26
  %v66 = vunpack.c.l.b16 %v27
  %v67 = vunpack.c.h.b16 %v27
  %v68 = vpack.c.b16 %v52, %v48
  %v69 = vpack.c.b16 %v53, %v49
  %v70 = vpack.c.b16 %v54, %v50
  %v71 = vpack.c.b16 %v55, %v51
  %v72 = vpack.c.b16 %v60, %v56
  %v73 = vpack.c.b16 %v61, %v57
  %v74 = vpack.c.b16 %v62, %v58
  %v75 = vpack.c.b16 %v63, %v59
  %v76 = vpack.c.b16 %v64, %v64
  %v77 = vpack.c.b16 %v65, %v65
  %v78 = vpack.c.b16 %v66, %v66
  %v79 = vpack.c.b16 %v67, %v67
  %vm88 = vcmask 293888
  %v90 = vsel %vm88, %v17, 0
  %vm92 = vcmask 1041408
  %v94 = vsel %vm92, %v76, 0
  %v97 = vsel %vm92, %v77, 0
  %v100 = vsel %vm92, %v78, 0
  %v103 = vsel %vm92, %v79, 0
  %105 = vmatprep.subr.bf16.mxu0 %v69
  %106 = vmatpush1.bf16.msra.mxu0 %v68
  %107 = vmatprep.subr.bf16.mxu0 %v73
  %108 = vmatpush1.bf16.msra.mxu0 %v72
  %109 = vmatprep.subr.bf16.mxu0 %v97
  %110 = vmatpush1.bf16.msra.mxu0 %v94
  %111 = vmatprep.subr.bf16.mxu0 0
  %112 = vmatpush1.bf16.msra.mxu0 0
  %113 = vmatprep.subr.bf16.mxu0 0
  %114 = vmatpush1.bf16.msra.mxu0 0
  %115 = vmatprep.subr.bf16.mxu0 0
  %116 = vmatpush1.bf16.msra.mxu0 0
  %117 = vmatprep.subr.bf16.mxu0 0
  %118 = vmatpush1.bf16.msra.mxu0 0
  %119 = vmatprep.subr.bf16.mxu0 0
  %120 = vmatpush1.bf16.msra.mxu0 0
  %121 = vmatprep.subr.bf16.mxu0 0
  %122 = vmatpush1.bf16.msra.mxu0 0
  %123 = vmatprep.subr.bf16.mxu0 0
  %124 = vmatpush1.bf16.msra.mxu0 0
  %125 = vmatprep.subr.bf16.mxu0 0
  %126 = vmatpush1.bf16.msra.mxu0 0
  %127 = vmatprep.subr.bf16.mxu0 0
  %128 = vmatpush1.bf16.msra.mxu0 0
  %129 = vmatprep.subr.bf16.mxu0 0
  %130 = vmatpush1.bf16.msra.mxu0 0
  %131 = vmatprep.subr.bf16.mxu0 0
  %132 = vmatpush1.bf16.msra.mxu0 0
  %133 = vmatprep.subr.bf16.mxu0 0
  %134 = vmatpush1.bf16.msra.mxu0 0
  %135 = vmatprep.subr.bf16.mxu0 0
  %136 = vmatpush1.bf16.msra.mxu0 0
  %137 = vmatprep.mubr.bf16.mxu0 0
  %138 = vmatmul.mubr.bf16.gmra.mrb[0].mxu0 %v90
  %v139 = vpop.f32.mrb[0].mxu0
  %v140 = vadd.f32 %v37, %v139
  %v141 = vpop.f32.mrb[0].mxu0
  %v142 = vadd.f32 %v37, %v141
  %v143 = vpop.f32.mrb[0].mxu0
  %v144 = vpop.f32.mrb[0].mxu0
  %145 = vdwg.mxu0
  %146 = vmatprep.subr.bf16.mxu0 %v71
  %147 = vmatpush1.bf16.msra.mxu0 %v70
  %148 = vmatprep.subr.bf16.mxu0 %v75
  %149 = vmatpush1.bf16.msra.mxu0 %v74
  %150 = vmatprep.subr.bf16.mxu0 %v103
  %151 = vmatpush1.bf16.msra.mxu0 %v100
  %152 = vmatprep.subr.bf16.mxu0 0
  %153 = vmatpush1.bf16.msra.mxu0 0
  %154 = vmatprep.subr.bf16.mxu0 0
  %155 = vmatpush1.bf16.msra.mxu0 0
  %156 = vmatprep.subr.bf16.mxu0 0
  %157 = vmatpush1.bf16.msra.mxu0 0
  %158 = vmatprep.subr.bf16.mxu0 0
  %159 = vmatpush1.bf16.msra.mxu0 0
  %160 = vmatprep.subr.bf16.mxu0 0
  %161 = vmatpush1.bf16.msra.mxu0 0
  %162 = vmatprep.subr.bf16.mxu0 0
  %163 = vmatpush1.bf16.msra.mxu0 0
  %164 = vmatprep.subr.bf16.mxu0 0
  %165 = vmatpush1.bf16.msra.mxu0 0
  %166 = vmatprep.subr.bf16.mxu0 0
  %167 = vmatpush1.bf16.msra.mxu0 0
  %168 = vmatprep.subr.bf16.mxu0 0
  %169 = vmatpush1.bf16.msra.mxu0 0
  %170 = vmatprep.subr.bf16.mxu0 0
  %171 = vmatpush1.bf16.msra.mxu0 0
  %172 = vmatprep.subr.bf16.mxu0 0
  %173 = vmatpush1.bf16.msra.mxu0 0
  %174 = vmatprep.subr.bf16.mxu0 0
  %175 = vmatpush1.bf16.msra.mxu0 0
  %176 = vmatprep.subr.bf16.mxu0 0
  %177 = vmatpush1.bf16.msra.mxu0 0
  %178 = vmatprep.mubr.bf16.mxu0 0
  %179 = vmatmul.mubr.bf16.gmra.mrb[0].mxu0 %v90
  %v180 = vpop.f32.mrb[0].mxu0
  %v181 = vadd.f32 %v37, %v180
  %v182 = vpop.f32.mrb[0].mxu0
  %v183 = vadd.f32 %v37, %v182
  %v184 = vpop.f32.mrb[0].mxu0
  %v185 = vpop.f32.mrb[0].mxu0
  %186 = vdwg.mxu0
  %v187 = vxor.u32 %v140, 2147483648
  %v188 = vxor.u32 %v142, 2147483648
  %v189 = vxor.u32 %v181, 2147483648
  %v190 = vxor.u32 %v183, 2147483648
  %v191 = vmul.f32 %v187, 1.442695
  %v192 = vpow.pop %v191
  %v193 = vmul.f32 %v188, 1.442695
  %v194 = vpow.pop %v193
  %v195 = vmul.f32 %v189, 1.442695
  %v196 = vpow.pop %v195
  %v197 = vmul.f32 %v190, 1.442695
  %v198 = vpow.pop %v197
  %v199 = vadd.f32 %v192, 1.0
  %v200 = vadd.f32 %v194, 1.0
  %v201 = vadd.f32 %v196, 1.0
  %v202 = vadd.f32 %v198, 1.0
  %v203 = vrcp.pop %v199
  %v204 = vmul.f32 1.0, %v203
  %v205 = vrcp.pop %v200
  %v206 = vmul.f32 1.0, %v205
  %v207 = vrcp.pop %v201
  %v208 = vmul.f32 1.0, %v207
  %v209 = vrcp.pop %v202
  %v210 = vmul.f32 1.0, %v209
  %v215 = vcombine.low %v204, %v206
  %v216 = vcombine.low %v208, %v210
  %v218 = vunpack.c.l.s4 1966171168
  %v219 = vunpack.c.0.s8 %v218
  %v220 = vlaneseq
  %v221 = vshrl.u32 %v220, 7
  %v222 = vsub.s32 %v219, %v221
  %v223 = vrot.slane %v215, %v222
  %v225 = vunpack.c.l.s4 1966171168
  %v226 = vunpack.c.0.s8 %v225
  %v227 = vlaneseq
  %v228 = vshrl.u32 %v227, 7
  %v229 = vsub.s32 %v226, %v228
  %v230 = vrot.slane %v216, %v229
  %v231 = vcombine.low %v223, %v230
  %v233 = vunpack.c.l.s4 1966171168
  %v234 = vunpack.c.0.s8 %v233
  %v235 = vlaneseq
  %v236 = vshrl.u32 %v235, 7
  %v237 = vsub.s32 %v234, %v236
  %v238 = vrot.slane %v231, %v237
  %v240 = vlaneseq
  %vm241 = vcmp.ge.s32.totalorder %v240, 0
  %vm242 = vcmp.lt.s32.totalorder %v240, 512
  %vm243 = vmand %vm241, %vm242
  %244 = vst.msk [vmem:[%s3] sm:$0xf] %vm243, %v238
  // Predicated region
  $region14: #{unet_forward.29} parent=0 // pred_check
    _
  $region15: #{unet_forward.29} parent=0 // pred_check_branch
    %246 = sbr.rel (0) target = $region17
  $region16: #{unet_forward.29} parent=0 // pred_region
    _
  $region17: #{unet_forward.29} parent=0 // pred_fallthru
    _
  // Predicated region
  $region18: #{unet_forward.29} parent=0 // pred_check
    _
  $region19: #{unet_forward.29} parent=0 // pred_check_branch
    %248 = sbr.rel (0) target = $region21
  $region20: #{unet_forward.29} parent=0 // pred_region
    _
  $region21: #{unet_forward.29} parent=0 // pred_fallthru
    _

</llo_original>
